<compile_context>
chip_gen: v7x
topology: tpu7x:2x2x1
jax: 0.10.0
libtpu: 0.0.40
codegen_flags: <defaults>
</compile_context>

<pallas_src>
import numpy as np
import jax
import jax.numpy as jnp
from jax import lax
from jax.experimental import pallas as pl
from jax.experimental.pallas import tpu as pltpu  # noqa: F401  (TPU backend)

_EPS = 1e-6

# Small, module-consistent shapes.
B, C_IN, H, W = 2, 4, 16, 16          # square input
HW = H * W
SEG_LABELS = 5                         # L (channel 0 = background)
K = SEG_LABELS - 1                     # foreground parts
DIM = 5                                # [class_score, cX, cY, sdX, sdY]
INPUT_DIM = K * DIM                    # (seg_labels - 1) * dim = 20
HIDDEN = 50
NUM_CLASSES = 10
OUT_PAD = 128                          # lane-dense output width (sliced outside)

# Host constants for the exact +_EPS bookkeeping of the bbox moments.
_C0 = (H - 1) / 2.0                                # grid center
_S1 = H * (H - 1) / 2.0                            # sum_i i
_S2C = float(np.sum((np.arange(H) - _C0) ** 2))    # sum_i (i - c0)^2


# ------------------------------ fused kernel ------------------------------ #

def _fused_kernel(img_ref, wsT_ref, bs_ref, basisT_ref,
                  w1_ref, b1_ref, w2_ref, b2_ref, out_ref):
    # --- segmenter: 1x1 conv == (B*HW, C) @ (C, L), whole batch at once ---
    lg_all = jnp.dot(img_ref[...], wsT_ref[...],
                     preferred_element_type=jnp.float32) + bs_ref[...]   # (B*HW, L)

    # softmax over the label (lane) axis
    mx = jnp.max(lg_all, axis=1, keepdims=True)
    ex = jnp.exp(lg_all - mx)
    sm_all = ex / jnp.sum(ex, axis=1, keepdims=True)                     # (B*HW, L)

    # foreground logit: sum_{l>=1} lg - lg[:, 0]  (built without lane slicing)
    sign = jnp.where(
        lax.broadcasted_iota(jnp.int32, (1, SEG_LABELS), 1) == 0, -1.0, 1.0)
    fg_all = jnp.sum(lg_all * sign, axis=1, keepdims=True)
    fg_all = 1.0 / (1.0 + jnp.exp(-fg_all))                              # (B*HW, 1)

    rows = []
    for b in range(B):                       # static unroll, B == 2
        r0 = b * HW
        lg = lg_all[r0:r0 + HW, :]           # (HW, L)
        sm = sm_all[r0:r0 + HW, :]           # (HW, L)
        fg = fg_all[r0:r0 + HW, :]           # (HW, 1)
        fg = fg / jnp.maximum(jnp.sum(fg), _EPS)

        # class scores; the background column is dropped by zero rows in w1_ext
        cs = jnp.sum(lg * fg, axis=0, keepdims=True)                     # (1, L)

        # all mask moments with one MXU matmul: basis(5,HW) @ softmax(HW,L)
        mom = jnp.dot(basisT_ref[...], sm,
                      preferred_element_type=jnp.float32)                # (5, L)
        m0 = mom[0:1, :]
        mxc, myc = mom[1:2, :], mom[2:3, :]
        mxx, myy = mom[3:4, :], mom[4:5, :]

        msum = m0 + _EPS
        cx = (mxc + _C0 * m0 + _EPS * _S1) / msum
        cy = (myc + _C0 * m0 + _EPS * _S1) / msum
        dx = cx - _C0
        dy = cy - _C0
        varx = (mxx + _EPS * _S2C) - 2.0 * dx * mxc + dx * dx * (m0 + _EPS * H)
        vary = (myy + _EPS * _S2C) - 2.0 * dy * myc + dy * dy * (m0 + _EPS * H)
        sdx = jnp.sqrt(jnp.maximum(varx, 0.0) / msum)
        sdy = jnp.sqrt(jnp.maximum(vary, 0.0) / msum)

        # feature-major row (1, 5*L); w1 was permuted/extended to match.
        rows.append(jnp.concatenate([cs, cx, cy, sdx, sdy], axis=1))

    x = jnp.concatenate(rows, axis=0)                                    # (B, 5L)

    # --- MLP head (BatchNorms folded into the linears at init time) ---
    h = jnp.dot(x, w1_ref[...], preferred_element_type=jnp.float32) + b1_ref[...]
    h = jnp.maximum(h, 0.0)
    out_ref[...] = jnp.dot(h, w2_ref[...],
                           preferred_element_type=jnp.float32) + b2_ref[...]


# ------------------------------ host wrapper ------------------------------ #

def weighted_bbox_forward(images, kp):
    b_, c_, h_, w_ = images.shape
    hw = h_ * w_
    # pixels on sublanes, channels on lanes: (B*HW, C)  (host-side glue, tiny)
    img2 = jnp.transpose(images.reshape(b_, c_, hw), (0, 2, 1)).reshape(b_ * hw, c_)

    out_pad = pl.pallas_call(            # single fused, grid-free kernel
        _fused_kernel,
        out_shape=jax.ShapeDtypeStruct((b_, OUT_PAD), jnp.float32),
    )(img2, kp["w_segT"], kp["b_seg_row"], kp["basisT"],
      kp["w1_ext"], kp["b1_ext"], kp["w2_pad"], kp["b2_pad"])

    return out_pad[:, :NUM_CLASSES]


# --------------------------- params & reference ---------------------------- #

def init_raw_params(key):
    ks = jax.random.split(key, 14)
    p = {}
    p["w_seg"] = 0.3 * jax.random.normal(ks[0], (SEG_LABELS, C_IN), jnp.float32)
    p["b_seg"] = 0.1 * jax.random.normal(ks[1], (SEG_LABELS,), jnp.float32)
    p["bn1_gamma"] = 1.0 + 0.1 * jax.random.normal(ks[2], (INPUT_DIM,), jnp.float32)
    p["bn1_beta"] = 0.1 * jax.random.normal(ks[3], (INPUT_DIM,), jnp.float32)
    p["bn1_mean"] = 0.5 * jax.random.normal(ks[4], (INPUT_DIM,), jnp.float32)
    p["bn1_var"] = jnp.abs(jax.random.normal(ks[5], (INPUT_DIM,), jnp.float32)) + 0.5
    p["w1"] = jax.random.normal(ks[6], (INPUT_DIM, HIDDEN), jnp.float32) / np.sqrt(INPUT_DIM)
    p["b1"] = 0.1 * jax.random.normal(ks[7], (HIDDEN,), jnp.float32)
    p["bn2_gamma"] = 1.0 + 0.1 * jax.random.normal(ks[8], (HIDDEN,), jnp.float32)
    p["bn2_beta"] = 0.1 * jax.random.normal(ks[9], (HIDDEN,), jnp.float32)
    p["bn2_mean"] = 0.5 * jax.random.normal(ks[10], (HIDDEN,), jnp.float32)
    p["bn2_var"] = jnp.abs(jax.random.normal(ks[11], (HIDDEN,), jnp.float32)) + 0.5
    p["w2"] = jax.random.normal(ks[12], (HIDDEN, NUM_CLASSES), jnp.float32) / np.sqrt(HIDDEN)
    p["b2"] = 0.1 * jax.random.normal(ks[13], (NUM_CLASSES,), jnp.float32)
    return p


def prepare_kernel_params(raw):
    """Host-side folding: segmenter transpose, moment basis, BN->Linear folding,
    feature-major/label-extended permutation of w1, lane-dense padding of w2."""
    r = {k: np.asarray(v) for k, v in raw.items()}
    kp = {}
    kp["w_segT"] = jnp.asarray(r["w_seg"].T.astype(np.float32))          # (C, L)
    kp["b_seg_row"] = jnp.asarray(r["b_seg"][None, :].astype(np.float32))  # (1, L)

    # moment basis rows [1, xc, yc, xc^2, yc^2]; pixel p = y*W + x (row-major).
    px = (np.arange(HW) % W).astype(np.float32) - _C0
    py = (np.arange(HW) // W).astype(np.float32) - _C0
    kp["basisT"] = jnp.asarray(
        np.stack([np.ones(HW, np.float32), px, py, px * px, py * py]))   # (5, HW)

    # Fold eval-mode BatchNorm1d into the adjacent Linear layers.
    s1 = r["bn1_gamma"] / np.sqrt(r["bn1_var"] + 1e-5)
    t1 = r["bn1_beta"] - r["bn1_mean"] * s1
    w1f = (s1[:, None] * r["w1"]).astype(np.float32)                     # (20, 50)
    b1f = (r["b1"] + t1 @ r["w1"]).astype(np.float32)                    # (50,)

    # Kernel feature layout: x[:, f*L + l] (feature-major, all labels incl. bg).
    j = np.arange(DIM * SEG_LABELS)
    f_idx, l_idx = j // SEG_LABELS, j % SEG_LABELS
    src = np.where(l_idx >= 1, (l_idx - 1) * DIM + f_idx, 0)
    w1_ext = w1f[src] * (l_idx >= 1)[:, None].astype(np.float32)         # (25, 50)
    kp["w1_ext"] = jnp.asarray(w1_ext)
    kp["b1_ext"] = jnp.asarray(b1f[None, :])                             # (1, 50)

    s2 = r["bn2_gamma"] / np.sqrt(r["bn2_var"] + 1e-5)
    t2 = r["bn2_beta"] - r["bn2_mean"] * s2
    w2f = (s2[:, None] * r["w2"]).astype(np.float32)                     # (50, 10)
    b2f = (r["b2"] + t2 @ r["w2"]).astype(np.float32)                    # (10,)
    w2_pad = np.zeros((HIDDEN, OUT_PAD), np.float32)
    w2_pad[:, :NUM_CLASSES] = w2f
    b2_pad = np.zeros((1, OUT_PAD), np.float32)
    b2_pad[0, :NUM_CLASSES] = b2f
    kp["w2_pad"] = jnp.asarray(w2_pad)
    kp["b2_pad"] = jnp.asarray(b2_pad)
    return kp


def reference_forward(images, p):
    """Pure-JAX reference mirroring the PyTorch forward semantics."""
    imgf = images.reshape(B, C_IN, HW)
    logits = jnp.einsum("lc,bcp->blp", p["w_seg"], imgf) + p["b_seg"][None, :, None]
    logits = logits.reshape(B, SEG_LABELS, H, W)
    sm = jax.nn.softmax(logits, axis=1)
    masks = sm[:, 1:]
    fg = jnp.sum(logits[:, 1:], axis=1, keepdims=True) - logits[:, 0:1]
    fg = jax.nn.sigmoid(fg)
    fg = fg / jnp.maximum(jnp.sum(fg, axis=(2, 3), keepdims=True), _EPS)
    class_scores = jnp.sum(logits[:, 1:] * fg, axis=(2, 3))
    mask_sums = jnp.sum(masks, axis=(2, 3)) + _EPS
    msX = jnp.sum(masks, axis=2) + _EPS
    msY = jnp.sum(masks, axis=3) + _EPS
    grid = jnp.arange(H, dtype=jnp.float32)[None, None, :]
    cX = jnp.sum(msX * grid, axis=2) / mask_sums
    cY = jnp.sum(msY * grid, axis=2) / mask_sums
    sdX = jnp.sqrt(jnp.sum(msX * (grid - cX[..., None]) ** 2, axis=2) / mask_sums)
    sdY = jnp.sqrt(jnp.sum(msY * (grid - cY[..., None]) ** 2, axis=2) / mask_sums)
    seg = jnp.stack([class_scores, cX, cY, sdX, sdY], axis=2)            # (B, K, 5)
    x = seg.reshape(B, INPUT_DIM)
    s1 = p["bn1_gamma"] / jnp.sqrt(p["bn1_var"] + 1e-5)
    t1 = p["bn1_beta"] - p["bn1_mean"] * s1
    x = x * s1 + t1
    h = jnp.maximum(x @ p["w1"] + p["b1"], 0.0)
    s2 = p["bn2_gamma"] / jnp.sqrt(p["bn2_var"] + 1e-5)
    t2 = p["bn2_beta"] - p["bn2_mean"] * s2
    h = h * s2 + t2
    return h @ p["w2"] + p["b2"]


if __name__ == "__main__":
    key = jax.random.PRNGKey(0)
    pkey, xkey = jax.random.split(key)
    raw = init_raw_params(pkey)
    kparams = prepare_kernel_params(raw)
    images = jax.random.normal(xkey, (B, C_IN, H, W), jnp.float32)

    out = weighted_bbox_forward(images, kparams)
    out = jax.block_until_ready(out)
    assert out.shape == (B, NUM_CLASSES)

    ref = reference_forward(images, raw)
    np.testing.assert_allclose(np.asarray(out), np.asarray(ref),
                               rtol=1e-2, atol=1e-2)
    print("KERNEL_OK")
</pallas_src>

<mosaic_0001>
module attributes {stable_mosaic.version = 11 : i64} {
  func.func @_fused_kernel(%arg0: memref<512x4xf32, #tpu.memory_space<vmem>>, %arg1: memref<4x5xf32, #tpu.memory_space<vmem>>, %arg2: memref<1x5xf32, #tpu.memory_space<vmem>>, %arg3: memref<5x256xf32, #tpu.memory_space<vmem>>, %arg4: memref<25x50xf32, #tpu.memory_space<vmem>>, %arg5: memref<1x50xf32, #tpu.memory_space<vmem>>, %arg6: memref<50x128xf32, #tpu.memory_space<vmem>>, %arg7: memref<1x128xf32, #tpu.memory_space<vmem>>, %arg8: memref<2x128xf32, #tpu.memory_space<vmem>>) attributes {dimension_semantics = [], scalar_prefetch = 0 : i64, scratch_operands = 0 : i64, tpu.core_type = #tpu.core_type<tc>} {
    %c0 = arith.constant 0 : index
    %c0_0 = arith.constant 0 : index
    %0 = vector.load %arg0[%c0, %c0_0] : memref<512x4xf32, #tpu.memory_space<vmem>>, vector<512x4xf32>
    %c0_1 = arith.constant 0 : index
    %c0_2 = arith.constant 0 : index
    %1 = vector.load %arg1[%c0_1, %c0_2] : memref<4x5xf32, #tpu.memory_space<vmem>>, vector<4x5xf32>
    %cst = arith.constant dense<0.000000e+00> : vector<512x5xf32>
    %2 = tpu.matmul %0, %1, %cst {dimension_numbers = #tpu.dot_dimension_numbers<[1], [0], [0], [1], [0, 0, 1, 1], [], []>} : vector<512x4xf32>, vector<4x5xf32>, vector<512x5xf32> -> vector<512x5xf32>
    %c0_3 = arith.constant 0 : index
    %c0_4 = arith.constant 0 : index
    %3 = vector.load %arg2[%c0_3, %c0_4] : memref<1x5xf32, #tpu.memory_space<vmem>>, vector<1x5xf32>
    %4 = vector.broadcast %3 : vector<1x5xf32> to vector<512x5xf32>
    %5 = arith.addf %2, %4 : vector<512x5xf32>
    %cst_5 = arith.constant dense<0xFF800000> : vector<512xf32>
    %6 = vector.multi_reduction <maximumf>, %5, %cst_5 [1] : vector<512x5xf32> to vector<512xf32>
    %7 = vector.shape_cast %6 : vector<512xf32> to vector<512x1xf32>
    %8 = vector.broadcast %7 : vector<512x1xf32> to vector<512x5xf32>
    %9 = arith.subf %5, %8 : vector<512x5xf32>
    %10 = math.exp %9 : vector<512x5xf32>
    %cst_6 = arith.constant dense<0.000000e+00> : vector<512xf32>
    %11 = vector.multi_reduction <add>, %10, %cst_6 [1] : vector<512x5xf32> to vector<512xf32>
    %12 = vector.shape_cast %11 : vector<512xf32> to vector<512x1xf32>
    %13 = vector.broadcast %12 : vector<512x1xf32> to vector<512x5xf32>
    %14 = arith.divf %10, %13 : vector<512x5xf32>
    %15 = tpu.iota {dimensions = array<i32: 1>} : vector<1x5xi32>
    %c0_i32 = arith.constant 0 : i32
    %16 = vector.broadcast %c0_i32 : i32 to vector<1x5xi32>
    %17 = arith.cmpi eq, %15, %16 : vector<1x5xi32>
    %cst_7 = arith.constant -1.000000e+00 : f32
    %cst_8 = arith.constant 1.000000e+00 : f32
    %18 = vector.broadcast %cst_7 : f32 to vector<1x5xf32>
    %19 = vector.broadcast %cst_8 : f32 to vector<1x5xf32>
    %20 = arith.select %17, %18, %19 : vector<1x5xi1>, vector<1x5xf32>
    %21 = vector.broadcast %20 : vector<1x5xf32> to vector<512x5xf32>
    %22 = arith.mulf %5, %21 : vector<512x5xf32>
    %cst_9 = arith.constant dense<0.000000e+00> : vector<512xf32>
    %23 = vector.multi_reduction <add>, %22, %cst_9 [1] : vector<512x5xf32> to vector<512xf32>
    %24 = vector.shape_cast %23 : vector<512xf32> to vector<512x1xf32>
    %cst_10 = arith.constant 0.000000e+00 : f32
    %25 = vector.broadcast %cst_10 : f32 to vector<512x1xf32>
    %26 = arith.subf %25, %24 : vector<512x1xf32>
    %27 = math.exp %26 : vector<512x1xf32>
    %cst_11 = arith.constant 1.000000e+00 : f32
    %28 = vector.broadcast %cst_11 : f32 to vector<512x1xf32>
    %29 = arith.addf %28, %27 : vector<512x1xf32>
    %cst_12 = arith.constant 1.000000e+00 : f32
    %30 = vector.broadcast %cst_12 : f32 to vector<512x1xf32>
    %31 = arith.divf %30, %29 : vector<512x1xf32>
    %32 = vector.extract_strided_slice %5 {offsets = [0, 0], sizes = [256, 5], strides = [1, 1]} : vector<512x5xf32> to vector<256x5xf32>
    %33 = vector.extract_strided_slice %14 {offsets = [0, 0], sizes = [256, 5], strides = [1, 1]} : vector<512x5xf32> to vector<256x5xf32>
    %34 = vector.extract_strided_slice %31 {offsets = [0, 0], sizes = [256, 1], strides = [1, 1]} : vector<512x1xf32> to vector<256x1xf32>
    %35 = vector.shape_cast %34 : vector<256x1xf32> to vector<1x256x1xf32>
    %cst_13 = arith.constant dense<0.000000e+00> : vector<1xf32>
    %36 = vector.multi_reduction <add>, %35, %cst_13 [1, 2] : vector<1x256x1xf32> to vector<1xf32>
    %37 = vector.shape_cast %36 : vector<1xf32> to vector<1x1x1xf32>
    %38 = vector.extract %37[0, 0, 0] : f32 from vector<1x1x1xf32>
    %cst_14 = arith.constant 9.99999997E-7 : f32
    %39 = arith.maximumf %38, %cst_14 : f32
    %40 = vector.broadcast %39 : f32 to vector<256x1xf32>
    %41 = arith.divf %34, %40 : vector<256x1xf32>
    %42 = vector.broadcast %41 : vector<256x1xf32> to vector<256x5xf32>
    %43 = arith.mulf %32, %42 : vector<256x5xf32>
    %cst_15 = arith.constant dense<0.000000e+00> : vector<5xf32>
    %44 = vector.multi_reduction <add>, %43, %cst_15 [0] : vector<256x5xf32> to vector<5xf32>
    %45 = vector.shape_cast %44 : vector<5xf32> to vector<1x5xf32>
    %c0_16 = arith.constant 0 : index
    %c0_17 = arith.constant 0 : index
    %46 = vector.load %arg3[%c0_16, %c0_17] : memref<5x256xf32, #tpu.memory_space<vmem>>, vector<5x256xf32>
    %cst_18 = arith.constant dense<0.000000e+00> : vector<5x5xf32>
    %47 = tpu.matmul %46, %33, %cst_18 {dimension_numbers = #tpu.dot_dimension_numbers<[1], [0], [0], [1], [0, 0, 1, 1], [], []>} : vector<5x256xf32>, vector<256x5xf32>, vector<5x5xf32> -> vector<5x5xf32>
    %48 = vector.extract_strided_slice %47 {offsets = [0, 0], sizes = [1, 5], strides = [1, 1]} : vector<5x5xf32> to vector<1x5xf32>
    %49 = vector.extract_strided_slice %47 {offsets = [1, 0], sizes = [1, 5], strides = [1, 1]} : vector<5x5xf32> to vector<1x5xf32>
    %50 = vector.extract_strided_slice %47 {offsets = [2, 0], sizes = [1, 5], strides = [1, 1]} : vector<5x5xf32> to vector<1x5xf32>
    %51 = vector.extract_strided_slice %47 {offsets = [3, 0], sizes = [1, 5], strides = [1, 1]} : vector<5x5xf32> to vector<1x5xf32>
    %52 = vector.extract_strided_slice %47 {offsets = [4, 0], sizes = [1, 5], strides = [1, 1]} : vector<5x5xf32> to vector<1x5xf32>
    %cst_19 = arith.constant 9.99999997E-7 : f32
    %53 = vector.broadcast %cst_19 : f32 to vector<1x5xf32>
    %54 = arith.addf %48, %53 : vector<1x5xf32>
    %cst_20 = arith.constant 7.500000e+00 : f32
    %55 = vector.broadcast %cst_20 : f32 to vector<1x5xf32>
    %56 = arith.mulf %55, %48 : vector<1x5xf32>
    %57 = arith.addf %49, %56 : vector<1x5xf32>
    %cst_21 = arith.constant 1.200000e-04 : f32
    %58 = vector.broadcast %cst_21 : f32 to vector<1x5xf32>
    %59 = arith.addf %57, %58 : vector<1x5xf32>
    %60 = arith.divf %59, %54 : vector<1x5xf32>
    %cst_22 = arith.constant 7.500000e+00 : f32
    %61 = vector.broadcast %cst_22 : f32 to vector<1x5xf32>
    %62 = arith.mulf %61, %48 : vector<1x5xf32>
    %63 = arith.addf %50, %62 : vector<1x5xf32>
    %cst_23 = arith.constant 1.200000e-04 : f32
    %64 = vector.broadcast %cst_23 : f32 to vector<1x5xf32>
    %65 = arith.addf %63, %64 : vector<1x5xf32>
    %66 = arith.divf %65, %54 : vector<1x5xf32>
    %cst_24 = arith.constant 7.500000e+00 : f32
    %67 = vector.broadcast %cst_24 : f32 to vector<1x5xf32>
    %68 = arith.subf %60, %67 : vector<1x5xf32>
    %cst_25 = arith.constant 7.500000e+00 : f32
    %69 = vector.broadcast %cst_25 : f32 to vector<1x5xf32>
    %70 = arith.subf %66, %69 : vector<1x5xf32>
    %cst_26 = arith.constant 3.400000e-04 : f32
    %71 = vector.broadcast %cst_26 : f32 to vector<1x5xf32>
    %72 = arith.addf %51, %71 : vector<1x5xf32>
    %cst_27 = arith.constant 2.000000e+00 : f32
    %73 = vector.broadcast %cst_27 : f32 to vector<1x5xf32>
    %74 = arith.mulf %73, %68 : vector<1x5xf32>
    %75 = arith.mulf %74, %49 : vector<1x5xf32>
    %76 = arith.subf %72, %75 : vector<1x5xf32>
    %77 = arith.mulf %68, %68 : vector<1x5xf32>
    %cst_28 = arith.constant 1.600000e-05 : f32
    %78 = vector.broadcast %cst_28 : f32 to vector<1x5xf32>
    %79 = arith.addf %48, %78 : vector<1x5xf32>
    %80 = arith.mulf %77, %79 : vector<1x5xf32>
    %81 = arith.addf %76, %80 : vector<1x5xf32>
    %cst_29 = arith.constant 3.400000e-04 : f32
    %82 = vector.broadcast %cst_29 : f32 to vector<1x5xf32>
    %83 = arith.addf %52, %82 : vector<1x5xf32>
    %cst_30 = arith.constant 2.000000e+00 : f32
    %84 = vector.broadcast %cst_30 : f32 to vector<1x5xf32>
    %85 = arith.mulf %84, %70 : vector<1x5xf32>
    %86 = arith.mulf %85, %50 : vector<1x5xf32>
    %87 = arith.subf %83, %86 : vector<1x5xf32>
    %88 = arith.mulf %70, %70 : vector<1x5xf32>
    %cst_31 = arith.constant 1.600000e-05 : f32
    %89 = vector.broadcast %cst_31 : f32 to vector<1x5xf32>
    %90 = arith.addf %48, %89 : vector<1x5xf32>
    %91 = arith.mulf %88, %90 : vector<1x5xf32>
    %92 = arith.addf %87, %91 : vector<1x5xf32>
    %cst_32 = arith.constant 0.000000e+00 : f32
    %93 = vector.broadcast %cst_32 : f32 to vector<1x5xf32>
    %94 = arith.maximumf %81, %93 : vector<1x5xf32>
    %95 = arith.divf %94, %54 : vector<1x5xf32>
    %96 = math.sqrt %95 : vector<1x5xf32>
    %cst_33 = arith.constant 0.000000e+00 : f32
    %97 = vector.broadcast %cst_33 : f32 to vector<1x5xf32>
    %98 = arith.maximumf %92, %97 : vector<1x5xf32>
    %99 = arith.divf %98, %54 : vector<1x5xf32>
    %100 = math.sqrt %99 : vector<1x5xf32>
    %101 = tpu.concatenate %45, %60, %66, %96, %100 in 1 : vector<1x5xf32>, vector<1x5xf32>, vector<1x5xf32>, vector<1x5xf32>, vector<1x5xf32> -> vector<1x25xf32>
    %102 = vector.extract_strided_slice %5 {offsets = [256, 0], sizes = [256, 5], strides = [1, 1]} : vector<512x5xf32> to vector<256x5xf32>
    %103 = vector.extract_strided_slice %14 {offsets = [256, 0], sizes = [256, 5], strides = [1, 1]} : vector<512x5xf32> to vector<256x5xf32>
    %104 = vector.extract_strided_slice %31 {offsets = [256, 0], sizes = [256, 1], strides = [1, 1]} : vector<512x1xf32> to vector<256x1xf32>
    %105 = vector.shape_cast %104 : vector<256x1xf32> to vector<1x256x1xf32>
    %cst_34 = arith.constant dense<0.000000e+00> : vector<1xf32>
    %106 = vector.multi_reduction <add>, %105, %cst_34 [1, 2] : vector<1x256x1xf32> to vector<1xf32>
    %107 = vector.shape_cast %106 : vector<1xf32> to vector<1x1x1xf32>
    %108 = vector.extract %107[0, 0, 0] : f32 from vector<1x1x1xf32>
    %cst_35 = arith.constant 9.99999997E-7 : f32
    %109 = arith.maximumf %108, %cst_35 : f32
    %110 = vector.broadcast %109 : f32 to vector<256x1xf32>
    %111 = arith.divf %104, %110 : vector<256x1xf32>
    %112 = vector.broadcast %111 : vector<256x1xf32> to vector<256x5xf32>
    %113 = arith.mulf %102, %112 : vector<256x5xf32>
    %cst_36 = arith.constant dense<0.000000e+00> : vector<5xf32>
    %114 = vector.multi_reduction <add>, %113, %cst_36 [0] : vector<256x5xf32> to vector<5xf32>
    %115 = vector.shape_cast %114 : vector<5xf32> to vector<1x5xf32>
    %c0_37 = arith.constant 0 : index
    %c0_38 = arith.constant 0 : index
    %116 = vector.load %arg3[%c0_37, %c0_38] : memref<5x256xf32, #tpu.memory_space<vmem>>, vector<5x256xf32>
    %cst_39 = arith.constant dense<0.000000e+00> : vector<5x5xf32>
    %117 = tpu.matmul %116, %103, %cst_39 {dimension_numbers = #tpu.dot_dimension_numbers<[1], [0], [0], [1], [0, 0, 1, 1], [], []>} : vector<5x256xf32>, vector<256x5xf32>, vector<5x5xf32> -> vector<5x5xf32>
    %118 = vector.extract_strided_slice %117 {offsets = [0, 0], sizes = [1, 5], strides = [1, 1]} : vector<5x5xf32> to vector<1x5xf32>
    %119 = vector.extract_strided_slice %117 {offsets = [1, 0], sizes = [1, 5], strides = [1, 1]} : vector<5x5xf32> to vector<1x5xf32>
    %120 = vector.extract_strided_slice %117 {offsets = [2, 0], sizes = [1, 5], strides = [1, 1]} : vector<5x5xf32> to vector<1x5xf32>
    %121 = vector.extract_strided_slice %117 {offsets = [3, 0], sizes = [1, 5], strides = [1, 1]} : vector<5x5xf32> to vector<1x5xf32>
    %122 = vector.extract_strided_slice %117 {offsets = [4, 0], sizes = [1, 5], strides = [1, 1]} : vector<5x5xf32> to vector<1x5xf32>
    %cst_40 = arith.constant 9.99999997E-7 : f32
    %123 = vector.broadcast %cst_40 : f32 to vector<1x5xf32>
    %124 = arith.addf %118, %123 : vector<1x5xf32>
    %cst_41 = arith.constant 7.500000e+00 : f32
    %125 = vector.broadcast %cst_41 : f32 to vector<1x5xf32>
    %126 = arith.mulf %125, %118 : vector<1x5xf32>
    %127 = arith.addf %119, %126 : vector<1x5xf32>
    %cst_42 = arith.constant 1.200000e-04 : f32
    %128 = vector.broadcast %cst_42 : f32 to vector<1x5xf32>
    %129 = arith.addf %127, %128 : vector<1x5xf32>
    %130 = arith.divf %129, %124 : vector<1x5xf32>
    %cst_43 = arith.constant 7.500000e+00 : f32
    %131 = vector.broadcast %cst_43 : f32 to vector<1x5xf32>
    %132 = arith.mulf %131, %118 : vector<1x5xf32>
    %133 = arith.addf %120, %132 : vector<1x5xf32>
    %cst_44 = arith.constant 1.200000e-04 : f32
    %134 = vector.broadcast %cst_44 : f32 to vector<1x5xf32>
    %135 = arith.addf %133, %134 : vector<1x5xf32>
    %136 = arith.divf %135, %124 : vector<1x5xf32>
    %cst_45 = arith.constant 7.500000e+00 : f32
    %137 = vector.broadcast %cst_45 : f32 to vector<1x5xf32>
    %138 = arith.subf %130, %137 : vector<1x5xf32>
    %cst_46 = arith.constant 7.500000e+00 : f32
    %139 = vector.broadcast %cst_46 : f32 to vector<1x5xf32>
    %140 = arith.subf %136, %139 : vector<1x5xf32>
    %cst_47 = arith.constant 3.400000e-04 : f32
    %141 = vector.broadcast %cst_47 : f32 to vector<1x5xf32>
    %142 = arith.addf %121, %141 : vector<1x5xf32>
    %cst_48 = arith.constant 2.000000e+00 : f32
    %143 = vector.broadcast %cst_48 : f32 to vector<1x5xf32>
    %144 = arith.mulf %143, %138 : vector<1x5xf32>
    %145 = arith.mulf %144, %119 : vector<1x5xf32>
    %146 = arith.subf %142, %145 : vector<1x5xf32>
    %147 = arith.mulf %138, %138 : vector<1x5xf32>
    %cst_49 = arith.constant 1.600000e-05 : f32
    %148 = vector.broadcast %cst_49 : f32 to vector<1x5xf32>
    %149 = arith.addf %118, %148 : vector<1x5xf32>
    %150 = arith.mulf %147, %149 : vector<1x5xf32>
    %151 = arith.addf %146, %150 : vector<1x5xf32>
    %cst_50 = arith.constant 3.400000e-04 : f32
    %152 = vector.broadcast %cst_50 : f32 to vector<1x5xf32>
    %153 = arith.addf %122, %152 : vector<1x5xf32>
    %cst_51 = arith.constant 2.000000e+00 : f32
    %154 = vector.broadcast %cst_51 : f32 to vector<1x5xf32>
    %155 = arith.mulf %154, %140 : vector<1x5xf32>
    %156 = arith.mulf %155, %120 : vector<1x5xf32>
    %157 = arith.subf %153, %156 : vector<1x5xf32>
    %158 = arith.mulf %140, %140 : vector<1x5xf32>
    %cst_52 = arith.constant 1.600000e-05 : f32
    %159 = vector.broadcast %cst_52 : f32 to vector<1x5xf32>
    %160 = arith.addf %118, %159 : vector<1x5xf32>
    %161 = arith.mulf %158, %160 : vector<1x5xf32>
    %162 = arith.addf %157, %161 : vector<1x5xf32>
    %cst_53 = arith.constant 0.000000e+00 : f32
    %163 = vector.broadcast %cst_53 : f32 to vector<1x5xf32>
    %164 = arith.maximumf %151, %163 : vector<1x5xf32>
    %165 = arith.divf %164, %124 : vector<1x5xf32>
    %166 = math.sqrt %165 : vector<1x5xf32>
    %cst_54 = arith.constant 0.000000e+00 : f32
    %167 = vector.broadcast %cst_54 : f32 to vector<1x5xf32>
    %168 = arith.maximumf %162, %167 : vector<1x5xf32>
    %169 = arith.divf %168, %124 : vector<1x5xf32>
    %170 = math.sqrt %169 : vector<1x5xf32>
    %171 = tpu.concatenate %115, %130, %136, %166, %170 in 1 : vector<1x5xf32>, vector<1x5xf32>, vector<1x5xf32>, vector<1x5xf32>, vector<1x5xf32> -> vector<1x25xf32>
    %172 = tpu.concatenate %101, %171 in 0 : vector<1x25xf32>, vector<1x25xf32> -> vector<2x25xf32>
    %c0_55 = arith.constant 0 : index
    %c0_56 = arith.constant 0 : index
    %173 = vector.load %arg4[%c0_55, %c0_56] : memref<25x50xf32, #tpu.memory_space<vmem>>, vector<25x50xf32>
    %cst_57 = arith.constant dense<0.000000e+00> : vector<2x50xf32>
    %174 = tpu.matmul %172, %173, %cst_57 {dimension_numbers = #tpu.dot_dimension_numbers<[1], [0], [0], [1], [0, 0, 1, 1], [], []>} : vector<2x25xf32>, vector<25x50xf32>, vector<2x50xf32> -> vector<2x50xf32>
    %c0_58 = arith.constant 0 : index
    %c0_59 = arith.constant 0 : index
    %175 = vector.load %arg5[%c0_58, %c0_59] : memref<1x50xf32, #tpu.memory_space<vmem>>, vector<1x50xf32>
    %176 = vector.broadcast %175 : vector<1x50xf32> to vector<2x50xf32>
    %177 = arith.addf %174, %176 : vector<2x50xf32>
    %cst_60 = arith.constant 0.000000e+00 : f32
    %178 = vector.broadcast %cst_60 : f32 to vector<2x50xf32>
    %179 = arith.maximumf %177, %178 : vector<2x50xf32>
    %c0_61 = arith.constant 0 : index
    %c0_62 = arith.constant 0 : index
    %180 = vector.load %arg6[%c0_61, %c0_62] : memref<50x128xf32, #tpu.memory_space<vmem>>, vector<50x128xf32>
    %cst_63 = arith.constant dense<0.000000e+00> : vector<2x128xf32>
    %181 = tpu.matmul %179, %180, %cst_63 {dimension_numbers = #tpu.dot_dimension_numbers<[1], [0], [0], [1], [0, 0, 1, 1], [], []>} : vector<2x50xf32>, vector<50x128xf32>, vector<2x128xf32> -> vector<2x128xf32>
    %c0_64 = arith.constant 0 : index
    %c0_65 = arith.constant 0 : index
    %182 = vector.load %arg7[%c0_64, %c0_65] : memref<1x128xf32, #tpu.memory_space<vmem>>, vector<1x128xf32>
    %183 = vector.broadcast %182 : vector<1x128xf32> to vector<2x128xf32>
    %184 = arith.addf %181, %183 : vector<2x128xf32>
    %c0_66 = arith.constant 0 : index
    %c0_67 = arith.constant 0 : index
    %185 = vector.load %arg8[%c0_66, %c0_67] : memref<2x128xf32, #tpu.memory_space<vmem>>, vector<2x128xf32>
    tpu.vector_store %arg8[%c0_66, %c0_67], %184 {strides = array<i32>} : memref<2x128xf32, #tpu.memory_space<vmem>>, vector<2x128xf32>,
    return
  }
}

</mosaic_0001>

<llo_original>
// kernel: tpu_custom_call.1
$region0: #{tpu_custom_call.1}
  #allocation0 [shape = 'u32[]', space=smem, size = 0x4, offset = 0x4, fixed_abs, tag = 'smem constant byte address 0x4 - core index']
  #allocation1 [shape = 'u32[144,128]{1,0:T(1,128)}', space=vmem, size = 0x12000, scoped, tag = 'internal scratch']
  %s0 = inlined_call_operand.vmem [shape: f32[512,4], index: 0, kind: input, shape index: {}]
  %s1 = inlined_call_operand.vmem [shape: f32[4,5], index: 1, kind: input, shape index: {}]
  %s2 = inlined_call_operand.vmem [shape: f32[1,5], index: 2, kind: input, shape index: {}]
  %s3 = inlined_call_operand.vmem [shape: f32[5,256], index: 3, kind: input, shape index: {}]
  %s4 = inlined_call_operand.vmem [shape: f32[25,50], index: 4, kind: input, shape index: {}]
  %s5 = inlined_call_operand.vmem [shape: f32[1,50], index: 5, kind: input, shape index: {}]
  %s6 = inlined_call_operand.vmem [shape: f32[50,128], index: 6, kind: input, shape index: {}]
  %s7 = inlined_call_operand.vmem [shape: f32[1,128], index: 7, kind: input, shape index: {}]
  %s8 = inlined_call_operand.hbm [shape: f32[2,128], index: 8, kind: output, shape index: {}]
  %s9 = sld [smem:[#allocation0]]
  $region42: #{tpu_custom_call.1} parent=0
    _
  %s11 = ssub.s32 1, %s9
  %s12 = scalar_select 0, %s11, %s9
  $region1: #{tpu_custom_call.1} parent=0
    #allocation2 [shape = 'u8[1024]{0}', space=vmem, size = 0x400, scoped, tag = 'output window, operand 0, single buffered']
    #allocation3 [shape = 's32[1]{0}', space=sflag, size = 0x4, scoped, tag = 'scoped memory for tpu_custom_call.1']
    %13 = vsyncpa [#allocation3], 0
    // Predicated region
    $region2: #{tpu_custom_call.1} parent=1 // pred_check
      _
    $region3: #{tpu_custom_call.1} parent=1 // pred_check_branch
      %15 = sbr.rel (0) target = $region5
    $region4: #{tpu_custom_call.1} parent=1 // pred_region
      _
    $region5: #{tpu_custom_call.1} parent=1 // pred_fallthru
      _
    // Predicated region
    $region6: #{tpu_custom_call.1} parent=1 // pred_check
      _
    $region7: #{tpu_custom_call.1} parent=1 // pred_check_branch
      %17 = sbr.rel (0) target = $region9
    $region8: #{tpu_custom_call.1} parent=1 // pred_region
      _
    $region9: #{tpu_custom_call.1} parent=1 // pred_fallthru
      _
    // Predicated region
    $region10: #{tpu_custom_call.1} parent=1 // pred_check
      _
    $region11: #{tpu_custom_call.1} parent=1 // pred_check_branch
      %19 = sbr.rel (0) target = $region13
    $region12: #{tpu_custom_call.1} parent=1 // pred_region
      _
    $region13: #{tpu_custom_call.1} parent=1 // pred_fallthru
      _
    // Predicated region
    $region14: #{tpu_custom_call.1} parent=1 // pred_check
      _
    $region15: #{tpu_custom_call.1} parent=1 // pred_check_branch
      %21 = sbr.rel (0) target = $region17
    $region16: #{tpu_custom_call.1} parent=1 // pred_region
      _
    $region17: #{tpu_custom_call.1} parent=1 // pred_fallthru
      _
    // Predicated region
    $region18: #{tpu_custom_call.1} parent=1 // pred_check
      _
    $region19: #{tpu_custom_call.1} parent=1 // pred_check_branch
      %23 = sbr.rel (0) target = $region21
    $region20: #{tpu_custom_call.1} parent=1 // pred_region
      _
    $region21: #{tpu_custom_call.1} parent=1 // pred_fallthru
      _
    // Predicated region
    $region22: #{tpu_custom_call.1} parent=1 // pred_check
      _
    $region23: #{tpu_custom_call.1} parent=1 // pred_check_branch
      %25 = sbr.rel (0) target = $region25
    $region24: #{tpu_custom_call.1} parent=1 // pred_region
      _
    $region25: #{tpu_custom_call.1} parent=1 // pred_fallthru
      _
    // Predicated region
    $region26: #{tpu_custom_call.1} parent=1 // pred_check
      _
    $region27: #{tpu_custom_call.1} parent=1 // pred_check_branch
      %27 = sbr.rel (0) target = $region29
    $region28: #{tpu_custom_call.1} parent=1 // pred_region
      _
    $region29: #{tpu_custom_call.1} parent=1 // pred_fallthru
      _
    // Predicated region
    $region30: #{tpu_custom_call.1} parent=1 // pred_check
      _
    $region31: #{tpu_custom_call.1} parent=1 // pred_check_branch
      %29 = sbr.rel (0) target = $region33
    $region32: #{tpu_custom_call.1} parent=1 // pred_region
      _
    $region33: #{tpu_custom_call.1} parent=1 // pred_fallthru
      _
    %v30 = vld [vmem:[%s0] sm:$0xff]
    %v31 = vld [vmem:[%s0 + $0x8] sm:$0xff]
    %v32 = vld [vmem:[%s0 + $0x10] sm:$0xff]
    %v33 = vld [vmem:[%s0 + $0x18] sm:$0xff]
    %v34 = vld [vmem:[%s0 + $0x20] sm:$0xff]
    %v35 = vld [vmem:[%s0 + $0x28] sm:$0xff]
    %v36 = vld [vmem:[%s0 + $0x30] sm:$0xff]
    %v37 = vld [vmem:[%s0 + $0x38] sm:$0xff]
    %v38 = vld [vmem:[%s0 + $0x40] sm:$0xff]
    %v39 = vld [vmem:[%s0 + $0x48] sm:$0xff]
    %v40 = vld [vmem:[%s0 + $0x50] sm:$0xff]
    %v41 = vld [vmem:[%s0 + $0x58] sm:$0xff]
    %v42 = vld [vmem:[%s0 + $0x60] sm:$0xff]
    %v43 = vld [vmem:[%s0 + $0x68] sm:$0xff]
    %v44 = vld [vmem:[%s0 + $0x70] sm:$0xff]
    %v45 = vld [vmem:[%s0 + $0x78] sm:$0xff]
    %v46 = vld [vmem:[%s0 + $0x80] sm:$0xff]
    %v47 = vld [vmem:[%s0 + $0x88] sm:$0xff]
    %v48 = vld [vmem:[%s0 + $0x90] sm:$0xff]
    %v49 = vld [vmem:[%s0 + $0x98] sm:$0xff]
    %v50 = vld [vmem:[%s0 + $0xa0] sm:$0xff]
    %v51 = vld [vmem:[%s0 + $0xa8] sm:$0xff]
    %v52 = vld [vmem:[%s0 + $0xb0] sm:$0xff]
    %v53 = vld [vmem:[%s0 + $0xb8] sm:$0xff]
    %v54 = vld [vmem:[%s0 + $0xc0] sm:$0xff]
    %v55 = vld [vmem:[%s0 + $0xc8] sm:$0xff]
    %v56 = vld [vmem:[%s0 + $0xd0] sm:$0xff]
    %v57 = vld [vmem:[%s0 + $0xd8] sm:$0xff]
    %v58 = vld [vmem:[%s0 + $0xe0] sm:$0xff]
    %v59 = vld [vmem:[%s0 + $0xe8] sm:$0xff]
    %v60 = vld [vmem:[%s0 + $0xf0] sm:$0xff]
    %v61 = vld [vmem:[%s0 + $0xf8] sm:$0xff]
    %v62 = vld [vmem:[%s0 + $0x100] sm:$0xff]
    %v63 = vld [vmem:[%s0 + $0x108] sm:$0xff]
    %v64 = vld [vmem:[%s0 + $0x110] sm:$0xff]
    %v65 = vld [vmem:[%s0 + $0x118] sm:$0xff]
    %v66 = vld [vmem:[%s0 + $0x120] sm:$0xff]
    %v67 = vld [vmem:[%s0 + $0x128] sm:$0xff]
    %v68 = vld [vmem:[%s0 + $0x130] sm:$0xff]
    %v69 = vld [vmem:[%s0 + $0x138] sm:$0xff]
    %v70 = vld [vmem:[%s0 + $0x140] sm:$0xff]
    %v71 = vld [vmem:[%s0 + $0x148] sm:$0xff]
    %v72 = vld [vmem:[%s0 + $0x150] sm:$0xff]
    %v73 = vld [vmem:[%s0 + $0x158] sm:$0xff]
    %v74 = vld [vmem:[%s0 + $0x160] sm:$0xff]
    %v75 = vld [vmem:[%s0 + $0x168] sm:$0xff]
    %v76 = vld [vmem:[%s0 + $0x170] sm:$0xff]
    %v77 = vld [vmem:[%s0 + $0x178] sm:$0xff]
    %v78 = vld [vmem:[%s0 + $0x180] sm:$0xff]
    %v79 = vld [vmem:[%s0 + $0x188] sm:$0xff]
    %v80 = vld [vmem:[%s0 + $0x190] sm:$0xff]
    %v81 = vld [vmem:[%s0 + $0x198] sm:$0xff]
    %v82 = vld [vmem:[%s0 + $0x1a0] sm:$0xff]
    %v83 = vld [vmem:[%s0 + $0x1a8] sm:$0xff]
    %v84 = vld [vmem:[%s0 + $0x1b0] sm:$0xff]
    %v85 = vld [vmem:[%s0 + $0x1b8] sm:$0xff]
    %v86 = vld [vmem:[%s0 + $0x1c0] sm:$0xff]
    %v87 = vld [vmem:[%s0 + $0x1c8] sm:$0xff]
    %v88 = vld [vmem:[%s0 + $0x1d0] sm:$0xff]
    %v89 = vld [vmem:[%s0 + $0x1d8] sm:$0xff]
    %v90 = vld [vmem:[%s0 + $0x1e0] sm:$0xff]
    %v91 = vld [vmem:[%s0 + $0x1e8] sm:$0xff]
    %v92 = vld [vmem:[%s0 + $0x1f0] sm:$0xff]
    %v93 = vld [vmem:[%s0 + $0x1f8] sm:$0xff]
    %v94 = vld [vmem:[%s1] sm:$0xf]
    %v95 = vld [vmem:[%s2] sm:$0x1]
    %v97 = vlaneseq
    %v98 = vshrl.u32 %v97, 7
    %v99 = vsub.s32 0, %v98
    %v100 = vrot.slane %v95, %v99
    %vm102 = vcmask 31744
    %v104 = vsel %vm102, %v30, 0
    %v107 = vsel %vm102, %v31, 0
    %v110 = vsel %vm102, %v32, 0
    %v113 = vsel %vm102, %v33, 0
    %v116 = vsel %vm102, %v34, 0
    %v119 = vsel %vm102, %v35, 0
    %v122 = vsel %vm102, %v36, 0
    %v125 = vsel %vm102, %v37, 0
    %v128 = vsel %vm102, %v38, 0
    %v131 = vsel %vm102, %v39, 0
    %v134 = vsel %vm102, %v40, 0
    %v137 = vsel %vm102, %v41, 0
    %v140 = vsel %vm102, %v42, 0
    %v143 = vsel %vm102, %v43, 0
    %v146 = vsel %vm102, %v44, 0
    %v149 = vsel %vm102, %v45, 0
    %v152 = vsel %vm102, %v46, 0
    %v155 = vsel %vm102, %v47, 0
    %v158 = vsel %vm102, %v48, 0
    %v161 = vsel %vm102, %v49, 0
    %v164 = vsel %vm102, %v50, 0
    %v167 = vsel %vm102, %v51, 0
    %v170 = vsel %vm102, %v52, 0
    %v173 = vsel %vm102, %v53, 0
    %v176 = vsel %vm102, %v54, 0
    %v179 = vsel %vm102, %v55, 0
    %v182 = vsel %vm102, %v56, 0
    %v185 = vsel %vm102, %v57, 0
    %v188 = vsel %vm102, %v58, 0
    %v191 = vsel %vm102, %v59, 0
    %v194 = vsel %vm102, %v60, 0
    %v197 = vsel %vm102, %v61, 0
    %v200 = vsel %vm102, %v62, 0
    %v203 = vsel %vm102, %v63, 0
    %v206 = vsel %vm102, %v64, 0
    %v209 = vsel %vm102, %v65, 0
    %v212 = vsel %vm102, %v66, 0
    %v215 = vsel %vm102, %v67, 0
    %v218 = vsel %vm102, %v68, 0
    %v221 = vsel %vm102, %v69, 0
    %v224 = vsel %vm102, %v70, 0
    %v227 = vsel %vm102, %v71, 0
    %v230 = vsel %vm102, %v72, 0
    %v233 = vsel %vm102, %v73, 0
    %v236 = vsel %vm102, %v74, 0
    %v239 = vsel %vm102, %v75, 0
    %v242 = vsel %vm102, %v76, 0
    %v245 = vsel %vm102, %v77, 0
    %v248 = vsel %vm102, %v78, 0
    %v251 = vsel %vm102, %v79, 0
    %v254 = vsel %vm102, %v80, 0
    %v257 = vsel %vm102, %v81, 0
    %v260 = vsel %vm102, %v82, 0
    %v263 = vsel %vm102, %v83, 0
    %v266 = vsel %vm102, %v84, 0
    %v269 = vsel %vm102, %v85, 0
    %v272 = vsel %vm102, %v86, 0
    %v275 = vsel %vm102, %v87, 0
    %v278 = vsel %vm102, %v88, 0
    %v281 = vsel %vm102, %v89, 0
    %v284 = vsel %vm102, %v90, 0
    %v287 = vsel %vm102, %v91, 0
    %v290 = vsel %vm102, %v92, 0
    %v293 = vsel %vm102, %v93, 0
    %vm295 = vcmask 1043456
    %v297 = vsel %vm295, %v94, 0
    %299 = vmatprep.subr.mxu0 0.0
    %300 = vmatpush1.msra.mxu0 %v297
    %301 = vmatprep.subr.mxu0 0.0
    %302 = vmatpush1.msra.mxu0 0.0
    %303 = vmatprep.subr.mxu0 0.0
    %304 = vmatpush1.msra.mxu0 0.0
    %305 = vmatprep.subr.mxu0 0.0
    %306 = vmatpush1.msra.mxu0 0.0
    %307 = vmatprep.subr.mxu0 0.0
    %308 = vmatpush1.msra.mxu0 0.0
    %309 = vmatprep.subr.mxu0 0.0
    %310 = vmatpush1.msra.mxu0 0.0
    %311 = vmatprep.subr.mxu0 0.0
    %312 = vmatpush1.msra.mxu0 0.0
    %313 = vmatprep.subr.mxu0 0.0
    %314 = vmatpush1.msra.mxu0 0.0
    %315 = vmatprep.subr.mxu0 0.0
    %316 = vmatpush1.msra.mxu0 0.0
    %317 = vmatprep.subr.mxu0 0.0
    %318 = vmatpush1.msra.mxu0 0.0
    %319 = vmatprep.subr.mxu0 0.0
    %320 = vmatpush1.msra.mxu0 0.0
    %321 = vmatprep.subr.mxu0 0.0
    %322 = vmatpush1.msra.mxu0 0.0
    %323 = vmatprep.subr.mxu0 0.0
    %324 = vmatpush1.msra.mxu0 0.0
    %325 = vmatprep.subr.mxu0 0.0
    %326 = vmatpush1.msra.mxu0 0.0
    %327 = vmatprep.subr.mxu0 0.0
    %328 = vmatpush1.msra.mxu0 0.0
    %329 = vmatprep.subr.mxu0 0.0
    %330 = vmatpush1.msra.mxu0 0.0
    %331 = vmatprep.subr.mxu0 0.0
    %332 = vmatpush1.msra.mxu0 0.0
    %333 = vmatprep.subr.mxu0 0.0
    %334 = vmatpush1.msra.mxu0 0.0
    %335 = vmatprep.subr.mxu0 0.0
    %336 = vmatpush1.msra.mxu0 0.0
    %337 = vmatprep.subr.mxu0 0.0
    %338 = vmatpush1.msra.mxu0 0.0
    %339 = vmatprep.subr.mxu0 0.0
    %340 = vmatpush1.msra.mxu0 0.0
    %341 = vmatprep.subr.mxu0 0.0
    %342 = vmatpush1.msra.mxu0 0.0
    %343 = vmatprep.subr.mxu0 0.0
    %344 = vmatpush1.msra.mxu0 0.0
    %345 = vmatprep.subr.mxu0 0.0
    %346 = vmatpush1.msra.mxu0 0.0
    %347 = vmatprep.subr.mxu0 0.0
    %348 = vmatpush1.msra.mxu0 0.0
    %349 = vmatprep.subr.mxu0 0.0
    %350 = vmatpush1.msra.mxu0 0.0
    %351 = vmatprep.subr.mxu0 0.0
    %352 = vmatpush1.msra.mxu0 0.0
    %353 = vmatprep.subr.mxu0 0.0
    %354 = vmatpush1.msra.mxu0 0.0
    %355 = vmatprep.subr.mxu0 0.0
    %356 = vmatpush1.msra.mxu0 0.0
    %357 = vmatprep.subr.mxu0 0.0
    %358 = vmatpush1.msra.mxu0 0.0
    %359 = vmatprep.subr.mxu0 0.0
    %360 = vmatpush1.msra.mxu0 0.0
    %361 = vmatprep.subr.mxu0 0.0
    %362 = vmatpush1.msra.mxu0 0.0
    %363 = vmatprep.mubr.f32.mxu0 0.0
    %364 = vmatmul.mubr.f32.gmra.mrb[0].mxu0 %v104
    %v365 = vpop.f32.mrb[0].mxu0
    %v366 = vadd.f32 %v100, %v365
    %v367 = vpop.f32.mrb[0].mxu0
    %368 = vmatprep.mubr.f32.mxu0 0.0
    %369 = vmatmul.mubr.f32.gmra.mrb[0].mxu0 %v107
    %v370 = vpop.f32.mrb[0].mxu0
    %v371 = vadd.f32 %v100, %v370
    %v372 = vpop.f32.mrb[0].mxu0
    %373 = vmatprep.mubr.f32.mxu0 0.0
    %374 = vmatmul.mubr.f32.gmra.mrb[0].mxu0 %v110
    %v375 = vpop.f32.mrb[0].mxu0
    %v376 = vadd.f32 %v100, %v375
    %v377 = vpop.f32.mrb[0].mxu0
    %378 = vmatprep.mubr.f32.mxu0 0.0
    %379 = vmatmul.mubr.f32.gmra.mrb[0].mxu0 %v113
    %v380 = vpop.f32.mrb[0].mxu0
    %v381 = vadd.f32 %v100, %v380
    %v382 = vpop.f32.mrb[0].mxu0
    %383 = vmatprep.mubr.f32.mxu0 0.0
    %384 = vmatmul.mubr.f32.gmra.mrb[0].mxu0 %v116
    %v385 = vpop.f32.mrb[0].mxu0
    %v386 = vadd.f32 %v100, %v385
    %v387 = vpop.f32.mrb[0].mxu0
    %388 = vmatprep.mubr.f32.mxu0 0.0
    %389 = vmatmul.mubr.f32.gmra.mrb[0].mxu0 %v119
    %v390 = vpop.f32.mrb[0].mxu0
    %v391 = vadd.f32 %v100, %v390
    %v392 = vpop.f32.mrb[0].mxu0
    %393 = vmatprep.mubr.f32.mxu0 0.0
    %394 = vmatmul.mubr.f32.gmra.mrb[0].mxu0 %v122
    %v395 = vpop.f32.mrb[0].mxu0
    %v396 = vadd.f32 %v100, %v395
    %v397 = vpop.f32.mrb[0].mxu0
    %398 = vmatprep.mubr.f32.mxu0 0.0
    %399 = vmatmul.mubr.f32.gmra.mrb[0].mxu0 %v125
    %v400 = vpop.f32.mrb[0].mxu0
    %v401 = vadd.f32 %v100, %v400
    %v402 = vpop.f32.mrb[0].mxu0
    %403 = vmatprep.mubr.f32.mxu0 0.0
    %404 = vmatmul.mubr.f32.gmra.mrb[0].mxu0 %v128
    %v405 = vpop.f32.mrb[0].mxu0
    %v406 = vadd.f32 %v100, %v405
    %v407 = vpop.f32.mrb[0].mxu0
    %408 = vmatprep.mubr.f32.mxu0 0.0
    %409 = vmatmul.mubr.f32.gmra.mrb[0].mxu0 %v131
    %v410 = vpop.f32.mrb[0].mxu0
    %v411 = vadd.f32 %v100, %v410
    %v412 = vpop.f32.mrb[0].mxu0
    %413 = vmatprep.mubr.f32.mxu0 0.0
    %414 = vmatmul.mubr.f32.gmra.mrb[0].mxu0 %v134
    %v415 = vpop.f32.mrb[0].mxu0
    %v416 = vadd.f32 %v100, %v415
    %v417 = vpop.f32.mrb[0].mxu0
    %418 = vmatprep.mubr.f32.mxu0 0.0
    %419 = vmatmul.mubr.f32.gmra.mrb[0].mxu0 %v137
    %v420 = vpop.f32.mrb[0].mxu0
    %v421 = vadd.f32 %v100, %v420
    %v422 = vpop.f32.mrb[0].mxu0
    %423 = vmatprep.mubr.f32.mxu0 0.0
    %424 = vmatmul.mubr.f32.gmra.mrb[0].mxu0 %v140
    %v425 = vpop.f32.mrb[0].mxu0
    %v426 = vadd.f32 %v100, %v425
    %v427 = vpop.f32.mrb[0].mxu0
    %428 = vmatprep.mubr.f32.mxu0 0.0
    %429 = vmatmul.mubr.f32.gmra.mrb[0].mxu0 %v143
    %v430 = vpop.f32.mrb[0].mxu0
    %v431 = vadd.f32 %v100, %v430
    %v432 = vpop.f32.mrb[0].mxu0
    %433 = vmatprep.mubr.f32.mxu0 0.0
    %434 = vmatmul.mubr.f32.gmra.mrb[0].mxu0 %v146
    %v435 = vpop.f32.mrb[0].mxu0
    %v436 = vadd.f32 %v100, %v435
    %v437 = vpop.f32.mrb[0].mxu0
    %438 = vmatprep.mubr.f32.mxu0 0.0
    %439 = vmatmul.mubr.f32.gmra.mrb[0].mxu0 %v149
    %v440 = vpop.f32.mrb[0].mxu0
    %v441 = vadd.f32 %v100, %v440
    %v442 = vpop.f32.mrb[0].mxu0
    %443 = vmatprep.mubr.f32.mxu0 0.0
    %444 = vmatmul.mubr.f32.gmra.mrb[0].mxu0 %v152
    %v445 = vpop.f32.mrb[0].mxu0
    %v446 = vadd.f32 %v100, %v445
    %v447 = vpop.f32.mrb[0].mxu0
    %448 = vmatprep.mubr.f32.mxu0 0.0
    %449 = vmatmul.mubr.f32.gmra.mrb[0].mxu0 %v155
    %v450 = vpop.f32.mrb[0].mxu0
    %v451 = vadd.f32 %v100, %v450
    %v452 = vpop.f32.mrb[0].mxu0
    %453 = vmatprep.mubr.f32.mxu0 0.0
    %454 = vmatmul.mubr.f32.gmra.mrb[0].mxu0 %v158
    %v455 = vpop.f32.mrb[0].mxu0
    %v456 = vadd.f32 %v100, %v455
    %v457 = vpop.f32.mrb[0].mxu0
    %458 = vmatprep.mubr.f32.mxu0 0.0
    %459 = vmatmul.mubr.f32.gmra.mrb[0].mxu0 %v161
    %v460 = vpop.f32.mrb[0].mxu0
    %v461 = vadd.f32 %v100, %v460
    %v462 = vpop.f32.mrb[0].mxu0
    %463 = vmatprep.mubr.f32.mxu0 0.0
    %464 = vmatmul.mubr.f32.gmra.mrb[0].mxu0 %v164
    %v465 = vpop.f32.mrb[0].mxu0
    %v466 = vadd.f32 %v100, %v465
    %v467 = vpop.f32.mrb[0].mxu0
    %468 = vmatprep.mubr.f32.mxu0 0.0
    %469 = vmatmul.mubr.f32.gmra.mrb[0].mxu0 %v167
    %v470 = vpop.f32.mrb[0].mxu0
    %v471 = vadd.f32 %v100, %v470
    %v472 = vpop.f32.mrb[0].mxu0
    %473 = vmatprep.mubr.f32.mxu0 0.0
    %474 = vmatmul.mubr.f32.gmra.mrb[0].mxu0 %v170
    %v475 = vpop.f32.mrb[0].mxu0
    %v476 = vadd.f32 %v100, %v475
    %v477 = vpop.f32.mrb[0].mxu0
    %478 = vmatprep.mubr.f32.mxu0 0.0
    %479 = vmatmul.mubr.f32.gmra.mrb[0].mxu0 %v173
    %v480 = vpop.f32.mrb[0].mxu0
    %v481 = vadd.f32 %v100, %v480
    %v482 = vpop.f32.mrb[0].mxu0
    %483 = vmatprep.mubr.f32.mxu0 0.0
    %484 = vmatmul.mubr.f32.gmra.mrb[0].mxu0 %v176
    %v485 = vpop.f32.mrb[0].mxu0
    %v486 = vadd.f32 %v100, %v485
    %v487 = vpop.f32.mrb[0].mxu0
    %488 = vmatprep.mubr.f32.mxu0 0.0
    %489 = vmatmul.mubr.f32.gmra.mrb[0].mxu0 %v179
    %v490 = vpop.f32.mrb[0].mxu0
    %v491 = vadd.f32 %v100, %v490
    %v492 = vpop.f32.mrb[0].mxu0
    %493 = vmatprep.mubr.f32.mxu0 0.0
    %494 = vmatmul.mubr.f32.gmra.mrb[0].mxu0 %v182
    %v495 = vpop.f32.mrb[0].mxu0
    %v496 = vadd.f32 %v100, %v495
    %v497 = vpop.f32.mrb[0].mxu0
    %498 = vmatprep.mubr.f32.mxu0 0.0
    %499 = vmatmul.mubr.f32.gmra.mrb[0].mxu0 %v185
    %v500 = vpop.f32.mrb[0].mxu0
    %v501 = vadd.f32 %v100, %v500
    %v502 = vpop.f32.mrb[0].mxu0
    %503 = vmatprep.mubr.f32.mxu0 0.0
    %504 = vmatmul.mubr.f32.gmra.mrb[0].mxu0 %v188
    %v505 = vpop.f32.mrb[0].mxu0
    %v506 = vadd.f32 %v100, %v505
    %v507 = vpop.f32.mrb[0].mxu0
    %508 = vmatprep.mubr.f32.mxu0 0.0
    %509 = vmatmul.mubr.f32.gmra.mrb[0].mxu0 %v191
    %v510 = vpop.f32.mrb[0].mxu0
    %v511 = vadd.f32 %v100, %v510
    %v512 = vpop.f32.mrb[0].mxu0
    %513 = vmatprep.mubr.f32.mxu0 0.0
    %514 = vmatmul.mubr.f32.gmra.mrb[0].mxu0 %v194
    %v515 = vpop.f32.mrb[0].mxu0
    %v516 = vadd.f32 %v100, %v515
    %v517 = vpop.f32.mrb[0].mxu0
    %518 = vmatprep.mubr.f32.mxu0 0.0
    %519 = vmatmul.mubr.f32.gmra.mrb[0].mxu0 %v197
    %v520 = vpop.f32.mrb[0].mxu0
    %v521 = vadd.f32 %v100, %v520
    %v522 = vpop.f32.mrb[0].mxu0
    %523 = vmatprep.mubr.f32.mxu0 0.0
    %524 = vmatmul.mubr.f32.gmra.mrb[0].mxu0 %v200
    %v525 = vpop.f32.mrb[0].mxu0
    %v526 = vadd.f32 %v100, %v525
    %v527 = vpop.f32.mrb[0].mxu0
    %528 = vmatprep.mubr.f32.mxu0 0.0
    %529 = vmatmul.mubr.f32.gmra.mrb[0].mxu0 %v203
    %v530 = vpop.f32.mrb[0].mxu0
    %v531 = vadd.f32 %v100, %v530
    %v532 = vpop.f32.mrb[0].mxu0
    %533 = vmatprep.mubr.f32.mxu0 0.0
    %534 = vmatmul.mubr.f32.gmra.mrb[0].mxu0 %v206
    %v535 = vpop.f32.mrb[0].mxu0
    %v536 = vadd.f32 %v100, %v535
    %v537 = vpop.f32.mrb[0].mxu0
    %538 = vmatprep.mubr.f32.mxu0 0.0
    %539 = vmatmul.mubr.f32.gmra.mrb[0].mxu0 %v209
    %v540 = vpop.f32.mrb[0].mxu0
    %v541 = vadd.f32 %v100, %v540
    %v542 = vpop.f32.mrb[0].mxu0
    %543 = vmatprep.mubr.f32.mxu0 0.0
    %544 = vmatmul.mubr.f32.gmra.mrb[0].mxu0 %v212
    %v545 = vpop.f32.mrb[0].mxu0
    %v546 = vadd.f32 %v100, %v545
    %v547 = vpop.f32.mrb[0].mxu0
    %548 = vmatprep.mubr.f32.mxu0 0.0
    %549 = vmatmul.mubr.f32.gmra.mrb[0].mxu0 %v215
    %v550 = vpop.f32.mrb[0].mxu0
    %v551 = vadd.f32 %v100, %v550
    %v552 = vpop.f32.mrb[0].mxu0
    %553 = vmatprep.mubr.f32.mxu0 0.0
    %554 = vmatmul.mubr.f32.gmra.mrb[0].mxu0 %v218
    %v555 = vpop.f32.mrb[0].mxu0
    %v556 = vadd.f32 %v100, %v555
    %v557 = vpop.f32.mrb[0].mxu0
    %558 = vmatprep.mubr.f32.mxu0 0.0
    %559 = vmatmul.mubr.f32.gmra.mrb[0].mxu0 %v221
    %v560 = vpop.f32.mrb[0].mxu0
    %v561 = vadd.f32 %v100, %v560
    %v562 = vpop.f32.mrb[0].mxu0
    %563 = vmatprep.mubr.f32.mxu0 0.0
    %564 = vmatmul.mubr.f32.gmra.mrb[0].mxu0 %v224
    %v565 = vpop.f32.mrb[0].mxu0
    %v566 = vadd.f32 %v100, %v565
    %v567 = vpop.f32.mrb[0].mxu0
    %568 = vmatprep.mubr.f32.mxu0 0.0
    %569 = vmatmul.mubr.f32.gmra.mrb[0].mxu0 %v227
    %v570 = vpop.f32.mrb[0].mxu0
    %v571 = vadd.f32 %v100, %v570
    %v572 = vpop.f32.mrb[0].mxu0
    %573 = vmatprep.mubr.f32.mxu0 0.0
    %574 = vmatmul.mubr.f32.gmra.mrb[0].mxu0 %v230
    %v575 = vpop.f32.mrb[0].mxu0
    %v576 = vadd.f32 %v100, %v575
    %v577 = vpop.f32.mrb[0].mxu0
    %578 = vmatprep.mubr.f32.mxu0 0.0
    %579 = vmatmul.mubr.f32.gmra.mrb[0].mxu0 %v233
    %v580 = vpop.f32.mrb[0].mxu0
    %v581 = vadd.f32 %v100, %v580
    %v582 = vpop.f32.mrb[0].mxu0
    %583 = vmatprep.mubr.f32.mxu0 0.0
    %584 = vmatmul.mubr.f32.gmra.mrb[0].mxu0 %v236
    %v585 = vpop.f32.mrb[0].mxu0
    %v586 = vadd.f32 %v100, %v585
    %v587 = vpop.f32.mrb[0].mxu0
    %588 = vmatprep.mubr.f32.mxu0 0.0
    %589 = vmatmul.mubr.f32.gmra.mrb[0].mxu0 %v239
    %v590 = vpop.f32.mrb[0].mxu0
    %v591 = vadd.f32 %v100, %v590
    %v592 = vpop.f32.mrb[0].mxu0
    %593 = vmatprep.mubr.f32.mxu0 0.0
    %594 = vmatmul.mubr.f32.gmra.mrb[0].mxu0 %v242
    %v595 = vpop.f32.mrb[0].mxu0
    %v596 = vadd.f32 %v100, %v595
    %v597 = vpop.f32.mrb[0].mxu0
    %598 = vmatprep.mubr.f32.mxu0 0.0
    %599 = vmatmul.mubr.f32.gmra.mrb[0].mxu0 %v245
    %v600 = vpop.f32.mrb[0].mxu0
    %v601 = vadd.f32 %v100, %v600
    %v602 = vpop.f32.mrb[0].mxu0
    %603 = vmatprep.mubr.f32.mxu0 0.0
    %604 = vmatmul.mubr.f32.gmra.mrb[0].mxu0 %v248
    %v605 = vpop.f32.mrb[0].mxu0
    %v606 = vadd.f32 %v100, %v605
    %v607 = vpop.f32.mrb[0].mxu0
    %608 = vmatprep.mubr.f32.mxu0 0.0
    %609 = vmatmul.mubr.f32.gmra.mrb[0].mxu0 %v251
    %v610 = vpop.f32.mrb[0].mxu0
    %v611 = vadd.f32 %v100, %v610
    %v612 = vpop.f32.mrb[0].mxu0
    %613 = vmatprep.mubr.f32.mxu0 0.0
    %614 = vmatmul.mubr.f32.gmra.mrb[0].mxu0 %v254
    %v615 = vpop.f32.mrb[0].mxu0
    %v616 = vadd.f32 %v100, %v615
    %v617 = vpop.f32.mrb[0].mxu0
    %618 = vmatprep.mubr.f32.mxu0 0.0
    %619 = vmatmul.mubr.f32.gmra.mrb[0].mxu0 %v257
    %v620 = vpop.f32.mrb[0].mxu0
    %v621 = vadd.f32 %v100, %v620
    %v622 = vpop.f32.mrb[0].mxu0
    %623 = vmatprep.mubr.f32.mxu0 0.0
    %624 = vmatmul.mubr.f32.gmra.mrb[0].mxu0 %v260
    %v625 = vpop.f32.mrb[0].mxu0
    %v626 = vadd.f32 %v100, %v625
    %v627 = vpop.f32.mrb[0].mxu0
    %628 = vmatprep.mubr.f32.mxu0 0.0
    %629 = vmatmul.mubr.f32.gmra.mrb[0].mxu0 %v263
    %v630 = vpop.f32.mrb[0].mxu0
    %v631 = vadd.f32 %v100, %v630
    %v632 = vpop.f32.mrb[0].mxu0
    %633 = vmatprep.mubr.f32.mxu0 0.0
    %634 = vmatmul.mubr.f32.gmra.mrb[0].mxu0 %v266
    %v635 = vpop.f32.mrb[0].mxu0
    %v636 = vadd.f32 %v100, %v635
    %v637 = vpop.f32.mrb[0].mxu0
    %638 = vmatprep.mubr.f32.mxu0 0.0
    %639 = vmatmul.mubr.f32.gmra.mrb[0].mxu0 %v269
    %v640 = vpop.f32.mrb[0].mxu0
    %v641 = vadd.f32 %v100, %v640
    %v642 = vpop.f32.mrb[0].mxu0
    %643 = vmatprep.mubr.f32.mxu0 0.0
    %644 = vmatmul.mubr.f32.gmra.mrb[0].mxu0 %v272
    %v645 = vpop.f32.mrb[0].mxu0
    %v646 = vadd.f32 %v100, %v645
    %v647 = vpop.f32.mrb[0].mxu0
    %648 = vmatprep.mubr.f32.mxu0 0.0
    %649 = vmatmul.mubr.f32.gmra.mrb[0].mxu0 %v275
    %v650 = vpop.f32.mrb[0].mxu0
    %v651 = vadd.f32 %v100, %v650
    %v652 = vpop.f32.mrb[0].mxu0
    %653 = vmatprep.mubr.f32.mxu0 0.0
    %654 = vmatmul.mubr.f32.gmra.mrb[0].mxu0 %v278
    %v655 = vpop.f32.mrb[0].mxu0
    %v656 = vadd.f32 %v100, %v655
    %v657 = vpop.f32.mrb[0].mxu0
    %658 = vmatprep.mubr.f32.mxu0 0.0
    %659 = vmatmul.mubr.f32.gmra.mrb[0].mxu0 %v281
    %v660 = vpop.f32.mrb[0].mxu0
    %v661 = vadd.f32 %v100, %v660
    %v662 = vpop.f32.mrb[0].mxu0
    %663 = vmatprep.mubr.f32.mxu0 0.0
    %664 = vmatmul.mubr.f32.gmra.mrb[0].mxu0 %v284
    %v665 = vpop.f32.mrb[0].mxu0
    %v666 = vadd.f32 %v100, %v665
    %v667 = vpop.f32.mrb[0].mxu0
    %668 = vmatprep.mubr.f32.mxu0 0.0
    %669 = vmatmul.mubr.f32.gmra.mrb[0].mxu0 %v287
    %v670 = vpop.f32.mrb[0].mxu0
    %v671 = vadd.f32 %v100, %v670
    %v672 = vpop.f32.mrb[0].mxu0
    %673 = vmatprep.mubr.f32.mxu0 0.0
    %674 = vmatmul.mubr.f32.gmra.mrb[0].mxu0 %v290
    %v675 = vpop.f32.mrb[0].mxu0
    %v676 = vadd.f32 %v100, %v675
    %v677 = vpop.f32.mrb[0].mxu0
    %678 = vmatprep.mubr.f32.mxu0 0.0
    %679 = vmatmul.mubr.f32.gmra.mrb[0].mxu0 %v293
    %v680 = vpop.f32.mrb[0].mxu0
    %v681 = vadd.f32 %v100, %v680
    %v682 = vpop.f32.mrb[0].mxu0
    %683 = vdwg.mxu0
    %vm684 = vcmask 39936
    %v685 = vsel %vm684, %v366, -inf
    %686 = vmax.xlane.f32.xlu0 %v685
    %v687 = vpop.xlane.xlu0 %686
    %v688 = vsel %vm684, %v371, -inf
    %689 = vmax.xlane.f32.xlu0 %v688
    %v690 = vpop.xlane.xlu0 %689
    %v691 = vsel %vm684, %v376, -inf
    %692 = vmax.xlane.f32.xlu0 %v691
    %v693 = vpop.xlane.xlu0 %692
    %v694 = vsel %vm684, %v381, -inf
    %695 = vmax.xlane.f32.xlu0 %v694
    %v696 = vpop.xlane.xlu0 %695
    %v697 = vsel %vm684, %v386, -inf
    %698 = vmax.xlane.f32.xlu0 %v697
    %v699 = vpop.xlane.xlu0 %698
    %v700 = vsel %vm684, %v391, -inf
    %701 = vmax.xlane.f32.xlu0 %v700
    %v702 = vpop.xlane.xlu0 %701
    %v703 = vsel %vm684, %v396, -inf
    %704 = vmax.xlane.f32.xlu0 %v703
    %v705 = vpop.xlane.xlu0 %704
    %v706 = vsel %vm684, %v401, -inf
    %707 = vmax.xlane.f32.xlu0 %v706
    %v708 = vpop.xlane.xlu0 %707
    %v709 = vsel %vm684, %v406, -inf
    %710 = vmax.xlane.f32.xlu0 %v709
    %v711 = vpop.xlane.xlu0 %710
    %v712 = vsel %vm684, %v411, -inf
    %713 = vmax.xlane.f32.xlu0 %v712
    %v714 = vpop.xlane.xlu0 %713
    %v715 = vsel %vm684, %v416, -inf
    %716 = vmax.xlane.f32.xlu0 %v715
    %v717 = vpop.xlane.xlu0 %716
    %v718 = vsel %vm684, %v421, -inf
    %719 = vmax.xlane.f32.xlu0 %v718
    %v720 = vpop.xlane.xlu0 %719
    %v721 = vsel %vm684, %v426, -inf
    %722 = vmax.xlane.f32.xlu0 %v721
    %v723 = vpop.xlane.xlu0 %722
    %v724 = vsel %vm684, %v431, -inf
    %725 = vmax.xlane.f32.xlu0 %v724
    %v726 = vpop.xlane.xlu0 %725
    %v727 = vsel %vm684, %v436, -inf
    %728 = vmax.xlane.f32.xlu0 %v727
    %v729 = vpop.xlane.xlu0 %728
    %v730 = vsel %vm684, %v441, -inf
    %731 = vmax.xlane.f32.xlu0 %v730
    %v732 = vpop.xlane.xlu0 %731
    %v733 = vsel %vm684, %v446, -inf
    %734 = vmax.xlane.f32.xlu0 %v733
    %v735 = vpop.xlane.xlu0 %734
    %v736 = vsel %vm684, %v451, -inf
    %737 = vmax.xlane.f32.xlu0 %v736
    %v738 = vpop.xlane.xlu0 %737
    %v739 = vsel %vm684, %v456, -inf
    %740 = vmax.xlane.f32.xlu0 %v739
    %v741 = vpop.xlane.xlu0 %740
    %v742 = vsel %vm684, %v461, -inf
    %743 = vmax.xlane.f32.xlu0 %v742
    %v744 = vpop.xlane.xlu0 %743
    %v745 = vsel %vm684, %v466, -inf
    %746 = vmax.xlane.f32.xlu0 %v745
    %v747 = vpop.xlane.xlu0 %746
    %v748 = vsel %vm684, %v471, -inf
    %749 = vmax.xlane.f32.xlu0 %v748
    %v750 = vpop.xlane.xlu0 %749
    %v751 = vsel %vm684, %v476, -inf
    %752 = vmax.xlane.f32.xlu0 %v751
    %v753 = vpop.xlane.xlu0 %752
    %v754 = vsel %vm684, %v481, -inf
    %755 = vmax.xlane.f32.xlu0 %v754
    %v756 = vpop.xlane.xlu0 %755
    %v757 = vsel %vm684, %v486, -inf
    %758 = vmax.xlane.f32.xlu0 %v757
    %v759 = vpop.xlane.xlu0 %758
    %v760 = vsel %vm684, %v491, -inf
    %761 = vmax.xlane.f32.xlu0 %v760
    %v762 = vpop.xlane.xlu0 %761
    %v763 = vsel %vm684, %v496, -inf
    %764 = vmax.xlane.f32.xlu0 %v763
    %v765 = vpop.xlane.xlu0 %764
    %v766 = vsel %vm684, %v501, -inf
    %767 = vmax.xlane.f32.xlu0 %v766
    %v768 = vpop.xlane.xlu0 %767
    %v769 = vsel %vm684, %v506, -inf
    %770 = vmax.xlane.f32.xlu0 %v769
    %v771 = vpop.xlane.xlu0 %770
    %v772 = vsel %vm684, %v511, -inf
    %773 = vmax.xlane.f32.xlu0 %v772
    %v774 = vpop.xlane.xlu0 %773
    %v775 = vsel %vm684, %v516, -inf
    %776 = vmax.xlane.f32.xlu0 %v775
    %v777 = vpop.xlane.xlu0 %776
    %v778 = vsel %vm684, %v521, -inf
    %779 = vmax.xlane.f32.xlu0 %v778
    %v780 = vpop.xlane.xlu0 %779
    %v781 = vsel %vm684, %v526, -inf
    %782 = vmax.xlane.f32.xlu0 %v781
    %v783 = vpop.xlane.xlu0 %782
    %v784 = vsel %vm684, %v531, -inf
    %785 = vmax.xlane.f32.xlu0 %v784
    %v786 = vpop.xlane.xlu0 %785
    %v787 = vsel %vm684, %v536, -inf
    %788 = vmax.xlane.f32.xlu0 %v787
    %v789 = vpop.xlane.xlu0 %788
    %v790 = vsel %vm684, %v541, -inf
    %791 = vmax.xlane.f32.xlu0 %v790
    %v792 = vpop.xlane.xlu0 %791
    %v793 = vsel %vm684, %v546, -inf
    %794 = vmax.xlane.f32.xlu0 %v793
    %v795 = vpop.xlane.xlu0 %794
    %v796 = vsel %vm684, %v551, -inf
    %797 = vmax.xlane.f32.xlu0 %v796
    %v798 = vpop.xlane.xlu0 %797
    %v799 = vsel %vm684, %v556, -inf
    %800 = vmax.xlane.f32.xlu0 %v799
    %v801 = vpop.xlane.xlu0 %800
    %v802 = vsel %vm684, %v561, -inf
    %803 = vmax.xlane.f32.xlu0 %v802
    %v804 = vpop.xlane.xlu0 %803
    %v805 = vsel %vm684, %v566, -inf
    %806 = vmax.xlane.f32.xlu0 %v805
    %v807 = vpop.xlane.xlu0 %806
    %v808 = vsel %vm684, %v571, -inf
    %809 = vmax.xlane.f32.xlu0 %v808
    %v810 = vpop.xlane.xlu0 %809
    %v811 = vsel %vm684, %v576, -inf
    %812 = vmax.xlane.f32.xlu0 %v811
    %v813 = vpop.xlane.xlu0 %812
    %v814 = vsel %vm684, %v581, -inf
    %815 = vmax.xlane.f32.xlu0 %v814
    %v816 = vpop.xlane.xlu0 %815
    %v817 = vsel %vm684, %v586, -inf
    %818 = vmax.xlane.f32.xlu0 %v817
    %v819 = vpop.xlane.xlu0 %818
    %v820 = vsel %vm684, %v591, -inf
    %821 = vmax.xlane.f32.xlu0 %v820
    %v822 = vpop.xlane.xlu0 %821
    %v823 = vsel %vm684, %v596, -inf
    %824 = vmax.xlane.f32.xlu0 %v823
    %v825 = vpop.xlane.xlu0 %824
    %v826 = vsel %vm684, %v601, -inf
    %827 = vmax.xlane.f32.xlu0 %v826
    %v828 = vpop.xlane.xlu0 %827
    %v829 = vsel %vm684, %v606, -inf
    %830 = vmax.xlane.f32.xlu0 %v829
    %v831 = vpop.xlane.xlu0 %830
    %v832 = vsel %vm684, %v611, -inf
    %833 = vmax.xlane.f32.xlu0 %v832
    %v834 = vpop.xlane.xlu0 %833
    %v835 = vsel %vm684, %v616, -inf
    %836 = vmax.xlane.f32.xlu0 %v835
    %v837 = vpop.xlane.xlu0 %836
    %v838 = vsel %vm684, %v621, -inf
    %839 = vmax.xlane.f32.xlu0 %v838
    %v840 = vpop.xlane.xlu0 %839
    %v841 = vsel %vm684, %v626, -inf
    %842 = vmax.xlane.f32.xlu0 %v841
    %v843 = vpop.xlane.xlu0 %842
    %v844 = vsel %vm684, %v631, -inf
    %845 = vmax.xlane.f32.xlu0 %v844
    %v846 = vpop.xlane.xlu0 %845
    %v847 = vsel %vm684, %v636, -inf
    %848 = vmax.xlane.f32.xlu0 %v847
    %v849 = vpop.xlane.xlu0 %848
    %v850 = vsel %vm684, %v641, -inf
    %851 = vmax.xlane.f32.xlu0 %v850
    %v852 = vpop.xlane.xlu0 %851
    %v853 = vsel %vm684, %v646, -inf
    %854 = vmax.xlane.f32.xlu0 %v853
    %v855 = vpop.xlane.xlu0 %854
    %v856 = vsel %vm684, %v651, -inf
    %857 = vmax.xlane.f32.xlu0 %v856
    %v858 = vpop.xlane.xlu0 %857
    %v859 = vsel %vm684, %v656, -inf
    %860 = vmax.xlane.f32.xlu0 %v859
    %v861 = vpop.xlane.xlu0 %860
    %v862 = vsel %vm684, %v661, -inf
    %863 = vmax.xlane.f32.xlu0 %v862
    %v864 = vpop.xlane.xlu0 %863
    %v865 = vsel %vm684, %v666, -inf
    %866 = vmax.xlane.f32.xlu0 %v865
    %v867 = vpop.xlane.xlu0 %866
    %v868 = vsel %vm684, %v671, -inf
    %869 = vmax.xlane.f32.xlu0 %v868
    %v870 = vpop.xlane.xlu0 %869
    %v871 = vsel %vm684, %v676, -inf
    %872 = vmax.xlane.f32.xlu0 %v871
    %v873 = vpop.xlane.xlu0 %872
    %v874 = vsel %vm684, %v681, -inf
    %875 = vmax.xlane.f32.xlu0 %v874
    %v876 = vpop.xlane.xlu0 %875
    %v877 = vsub.f32 %v366, %v687
    %v878 = vsub.f32 %v371, %v690
    %v879 = vsub.f32 %v376, %v693
    %v880 = vsub.f32 %v381, %v696
    %v881 = vsub.f32 %v386, %v699
    %v882 = vsub.f32 %v391, %v702
    %v883 = vsub.f32 %v396, %v705
    %v884 = vsub.f32 %v401, %v708
    %v885 = vsub.f32 %v406, %v711
    %v886 = vsub.f32 %v411, %v714
    %v887 = vsub.f32 %v416, %v717
    %v888 = vsub.f32 %v421, %v720
    %v889 = vsub.f32 %v426, %v723
    %v890 = vsub.f32 %v431, %v726
    %v891 = vsub.f32 %v436, %v729
    %v892 = vsub.f32 %v441, %v732
    %v893 = vsub.f32 %v446, %v735
    %v894 = vsub.f32 %v451, %v738
    %v895 = vsub.f32 %v456, %v741
    %v896 = vsub.f32 %v461, %v744
    %v897 = vsub.f32 %v466, %v747
    %v898 = vsub.f32 %v471, %v750
    %v899 = vsub.f32 %v476, %v753
    %v900 = vsub.f32 %v481, %v756
    %v901 = vsub.f32 %v486, %v759
    %v902 = vsub.f32 %v491, %v762
    %v903 = vsub.f32 %v496, %v765
    %v904 = vsub.f32 %v501, %v768
    %v905 = vsub.f32 %v506, %v771
    %v906 = vsub.f32 %v511, %v774
    %v907 = vsub.f32 %v516, %v777
    %v908 = vsub.f32 %v521, %v780
    %v909 = vsub.f32 %v526, %v783
    %v910 = vsub.f32 %v531, %v786
    %v911 = vsub.f32 %v536, %v789
    %v912 = vsub.f32 %v541, %v792
    %v913 = vsub.f32 %v546, %v795
    %v914 = vsub.f32 %v551, %v798
    %v915 = vsub.f32 %v556, %v801
    %v916 = vsub.f32 %v561, %v804
    %v917 = vsub.f32 %v566, %v807
    %v918 = vsub.f32 %v571, %v810
    %v919 = vsub.f32 %v576, %v813
    %v920 = vsub.f32 %v581, %v816
    %v921 = vsub.f32 %v586, %v819
    %v922 = vsub.f32 %v591, %v822
    %v923 = vsub.f32 %v596, %v825
    %v924 = vsub.f32 %v601, %v828
    %v925 = vsub.f32 %v606, %v831
    %v926 = vsub.f32 %v611, %v834
    %v927 = vsub.f32 %v616, %v837
    %v928 = vsub.f32 %v621, %v840
    %v929 = vsub.f32 %v626, %v843
    %v930 = vsub.f32 %v631, %v846
    %v931 = vsub.f32 %v636, %v849
    %v932 = vsub.f32 %v641, %v852
    %v933 = vsub.f32 %v646, %v855
    %v934 = vsub.f32 %v651, %v858
    %v935 = vsub.f32 %v656, %v861
    %v936 = vsub.f32 %v661, %v864
    %v937 = vsub.f32 %v666, %v867
    %v938 = vsub.f32 %v671, %v870
    %v939 = vsub.f32 %v676, %v873
    %v940 = vsub.f32 %v681, %v876
    %v941 = vmul.f32 %v877, 1.442695
    %v942 = vpow.pop %v941
    %v943 = vmul.f32 %v878, 1.442695
    %v944 = vpow.pop %v943
    %v945 = vmul.f32 %v879, 1.442695
    %v946 = vpow.pop %v945
    %v947 = vmul.f32 %v880, 1.442695
    %v948 = vpow.pop %v947
    %v949 = vmul.f32 %v881, 1.442695
    %v950 = vpow.pop %v949
    %v951 = vmul.f32 %v882, 1.442695
    %v952 = vpow.pop %v951
    %v953 = vmul.f32 %v883, 1.442695
    %v954 = vpow.pop %v953
    %v955 = vmul.f32 %v884, 1.442695
    %v956 = vpow.pop %v955
    %v957 = vmul.f32 %v885, 1.442695
    %v958 = vpow.pop %v957
    %v959 = vmul.f32 %v886, 1.442695
    %v960 = vpow.pop %v959
    %v961 = vmul.f32 %v887, 1.442695
    %v962 = vpow.pop %v961
    %v963 = vmul.f32 %v888, 1.442695
    %v964 = vpow.pop %v963
    %v965 = vmul.f32 %v889, 1.442695
    %v966 = vpow.pop %v965
    %v967 = vmul.f32 %v890, 1.442695
    %v968 = vpow.pop %v967
    %v969 = vmul.f32 %v891, 1.442695
    %v970 = vpow.pop %v969
    %v971 = vmul.f32 %v892, 1.442695
    %v972 = vpow.pop %v971
    %v973 = vmul.f32 %v893, 1.442695
    %v974 = vpow.pop %v973
    %v975 = vmul.f32 %v894, 1.442695
    %v976 = vpow.pop %v975
    %v977 = vmul.f32 %v895, 1.442695
    %v978 = vpow.pop %v977
    %v979 = vmul.f32 %v896, 1.442695
    %v980 = vpow.pop %v979
    %v981 = vmul.f32 %v897, 1.442695
    %v982 = vpow.pop %v981
    %v983 = vmul.f32 %v898, 1.442695
    %v984 = vpow.pop %v983
    %v985 = vmul.f32 %v899, 1.442695
    %v986 = vpow.pop %v985
    %v987 = vmul.f32 %v900, 1.442695
    %v988 = vpow.pop %v987
    %v989 = vmul.f32 %v901, 1.442695
    %v990 = vpow.pop %v989
    %v991 = vmul.f32 %v902, 1.442695
    %v992 = vpow.pop %v991
    %v993 = vmul.f32 %v903, 1.442695
    %v994 = vpow.pop %v993
    %v995 = vmul.f32 %v904, 1.442695
    %v996 = vpow.pop %v995
    %v997 = vmul.f32 %v905, 1.442695
    %v998 = vpow.pop %v997
    %v999 = vmul.f32 %v906, 1.442695
    %v1000 = vpow.pop %v999
    %v1001 = vmul.f32 %v907, 1.442695
    %v1002 = vpow.pop %v1001
    %v1003 = vmul.f32 %v908, 1.442695
    %v1004 = vpow.pop %v1003
    %v1005 = vmul.f32 %v909, 1.442695
    %v1006 = vpow.pop %v1005
    %v1007 = vmul.f32 %v910, 1.442695
    %v1008 = vpow.pop %v1007
    %v1009 = vmul.f32 %v911, 1.442695
    %v1010 = vpow.pop %v1009
    %v1011 = vmul.f32 %v912, 1.442695
    %v1012 = vpow.pop %v1011
    %v1013 = vmul.f32 %v913, 1.442695
    %v1014 = vpow.pop %v1013
    %v1015 = vmul.f32 %v914, 1.442695
    %v1016 = vpow.pop %v1015
    %v1017 = vmul.f32 %v915, 1.442695
    %v1018 = vpow.pop %v1017
    %v1019 = vmul.f32 %v916, 1.442695
    %v1020 = vpow.pop %v1019
    %v1021 = vmul.f32 %v917, 1.442695
    %v1022 = vpow.pop %v1021
    %v1023 = vmul.f32 %v918, 1.442695
    %v1024 = vpow.pop %v1023
    %v1025 = vmul.f32 %v919, 1.442695
    %v1026 = vpow.pop %v1025
    %v1027 = vmul.f32 %v920, 1.442695
    %v1028 = vpow.pop %v1027
    %v1029 = vmul.f32 %v921, 1.442695
    %v1030 = vpow.pop %v1029
    %v1031 = vmul.f32 %v922, 1.442695
    %v1032 = vpow.pop %v1031
    %v1033 = vmul.f32 %v923, 1.442695
    %v1034 = vpow.pop %v1033
    %v1035 = vmul.f32 %v924, 1.442695
    %v1036 = vpow.pop %v1035
    %v1037 = vmul.f32 %v925, 1.442695
    %v1038 = vpow.pop %v1037
    %v1039 = vmul.f32 %v926, 1.442695
    %v1040 = vpow.pop %v1039
    %v1041 = vmul.f32 %v927, 1.442695
    %v1042 = vpow.pop %v1041
    %v1043 = vmul.f32 %v928, 1.442695
    %v1044 = vpow.pop %v1043
    %v1045 = vmul.f32 %v929, 1.442695
    %v1046 = vpow.pop %v1045
    %v1047 = vmul.f32 %v930, 1.442695
    %v1048 = vpow.pop %v1047
    %v1049 = vmul.f32 %v931, 1.442695
    %v1050 = vpow.pop %v1049
    %v1051 = vmul.f32 %v932, 1.442695
    %v1052 = vpow.pop %v1051
    %v1053 = vmul.f32 %v933, 1.442695
    %v1054 = vpow.pop %v1053
    %v1055 = vmul.f32 %v934, 1.442695
    %v1056 = vpow.pop %v1055
    %v1057 = vmul.f32 %v935, 1.442695
    %v1058 = vpow.pop %v1057
    %v1059 = vmul.f32 %v936, 1.442695
    %v1060 = vpow.pop %v1059
    %v1061 = vmul.f32 %v937, 1.442695
    %v1062 = vpow.pop %v1061
    %v1063 = vmul.f32 %v938, 1.442695
    %v1064 = vpow.pop %v1063
    %v1065 = vmul.f32 %v939, 1.442695
    %v1066 = vpow.pop %v1065
    %v1067 = vmul.f32 %v940, 1.442695
    %v1068 = vpow.pop %v1067
    %v1069 = vsel %vm684, %v942, 0.0
    %1070 = vadd.xlane.f32.xlu0 %v1069
    %v1071 = vpop.xlane.xlu0 %1070
    %v1072 = vsel %vm684, %v944, 0.0
    %1073 = vadd.xlane.f32.xlu0 %v1072
    %v1074 = vpop.xlane.xlu0 %1073
    %v1075 = vsel %vm684, %v946, 0.0
    %1076 = vadd.xlane.f32.xlu0 %v1075
    %v1077 = vpop.xlane.xlu0 %1076
    %v1078 = vsel %vm684, %v948, 0.0
    %1079 = vadd.xlane.f32.xlu0 %v1078
    %v1080 = vpop.xlane.xlu0 %1079
    %v1081 = vsel %vm684, %v950, 0.0
    %1082 = vadd.xlane.f32.xlu0 %v1081
    %v1083 = vpop.xlane.xlu0 %1082
    %v1084 = vsel %vm684, %v952, 0.0
    %1085 = vadd.xlane.f32.xlu0 %v1084
    %v1086 = vpop.xlane.xlu0 %1085
    %v1087 = vsel %vm684, %v954, 0.0
    %1088 = vadd.xlane.f32.xlu0 %v1087
    %v1089 = vpop.xlane.xlu0 %1088
    %v1090 = vsel %vm684, %v956, 0.0
    %1091 = vadd.xlane.f32.xlu0 %v1090
    %v1092 = vpop.xlane.xlu0 %1091
    %v1093 = vsel %vm684, %v958, 0.0
    %1094 = vadd.xlane.f32.xlu0 %v1093
    %v1095 = vpop.xlane.xlu0 %1094
    %v1096 = vsel %vm684, %v960, 0.0
    %1097 = vadd.xlane.f32.xlu0 %v1096
    %v1098 = vpop.xlane.xlu0 %1097
    %v1099 = vsel %vm684, %v962, 0.0
    %1100 = vadd.xlane.f32.xlu0 %v1099
    %v1101 = vpop.xlane.xlu0 %1100
    %v1102 = vsel %vm684, %v964, 0.0
    %1103 = vadd.xlane.f32.xlu0 %v1102
    %v1104 = vpop.xlane.xlu0 %1103
    %v1105 = vsel %vm684, %v966, 0.0
    %1106 = vadd.xlane.f32.xlu0 %v1105
    %v1107 = vpop.xlane.xlu0 %1106
    %v1108 = vsel %vm684, %v968, 0.0
    %1109 = vadd.xlane.f32.xlu0 %v1108
    %v1110 = vpop.xlane.xlu0 %1109
    %v1111 = vsel %vm684, %v970, 0.0
    %1112 = vadd.xlane.f32.xlu0 %v1111
    %v1113 = vpop.xlane.xlu0 %1112
    %v1114 = vsel %vm684, %v972, 0.0
    %1115 = vadd.xlane.f32.xlu0 %v1114
    %v1116 = vpop.xlane.xlu0 %1115
    %v1117 = vsel %vm684, %v974, 0.0
    %1118 = vadd.xlane.f32.xlu0 %v1117
    %v1119 = vpop.xlane.xlu0 %1118
    %v1120 = vsel %vm684, %v976, 0.0
    %1121 = vadd.xlane.f32.xlu0 %v1120
    %v1122 = vpop.xlane.xlu0 %1121
    %v1123 = vsel %vm684, %v978, 0.0
    %1124 = vadd.xlane.f32.xlu0 %v1123
    %v1125 = vpop.xlane.xlu0 %1124
    %v1126 = vsel %vm684, %v980, 0.0
    %1127 = vadd.xlane.f32.xlu0 %v1126
    %v1128 = vpop.xlane.xlu0 %1127
    %v1129 = vsel %vm684, %v982, 0.0
    %1130 = vadd.xlane.f32.xlu0 %v1129
    %v1131 = vpop.xlane.xlu0 %1130
    %v1132 = vsel %vm684, %v984, 0.0
    %1133 = vadd.xlane.f32.xlu0 %v1132
    %v1134 = vpop.xlane.xlu0 %1133
    %v1135 = vsel %vm684, %v986, 0.0
    %1136 = vadd.xlane.f32.xlu0 %v1135
    %v1137 = vpop.xlane.xlu0 %1136
    %v1138 = vsel %vm684, %v988, 0.0
    %1139 = vadd.xlane.f32.xlu0 %v1138
    %v1140 = vpop.xlane.xlu0 %1139
    %v1141 = vsel %vm684, %v990, 0.0
    %1142 = vadd.xlane.f32.xlu0 %v1141
    %v1143 = vpop.xlane.xlu0 %1142
    %v1144 = vsel %vm684, %v992, 0.0
    %1145 = vadd.xlane.f32.xlu0 %v1144
    %v1146 = vpop.xlane.xlu0 %1145
    %v1147 = vsel %vm684, %v994, 0.0
    %1148 = vadd.xlane.f32.xlu0 %v1147
    %v1149 = vpop.xlane.xlu0 %1148
    %v1150 = vsel %vm684, %v996, 0.0
    %1151 = vadd.xlane.f32.xlu0 %v1150
    %v1152 = vpop.xlane.xlu0 %1151
    %v1153 = vsel %vm684, %v998, 0.0
    %1154 = vadd.xlane.f32.xlu0 %v1153
    %v1155 = vpop.xlane.xlu0 %1154
    %v1156 = vsel %vm684, %v1000, 0.0
    %1157 = vadd.xlane.f32.xlu0 %v1156
    %v1158 = vpop.xlane.xlu0 %1157
    %v1159 = vsel %vm684, %v1002, 0.0
    %1160 = vadd.xlane.f32.xlu0 %v1159
    %v1161 = vpop.xlane.xlu0 %1160
    %v1162 = vsel %vm684, %v1004, 0.0
    %1163 = vadd.xlane.f32.xlu0 %v1162
    %v1164 = vpop.xlane.xlu0 %1163
    %v1165 = vsel %vm684, %v1006, 0.0
    %1166 = vadd.xlane.f32.xlu0 %v1165
    %v1167 = vpop.xlane.xlu0 %1166
    %v1168 = vsel %vm684, %v1008, 0.0
    %1169 = vadd.xlane.f32.xlu0 %v1168
    %v1170 = vpop.xlane.xlu0 %1169
    %v1171 = vsel %vm684, %v1010, 0.0
    %1172 = vadd.xlane.f32.xlu0 %v1171
    %v1173 = vpop.xlane.xlu0 %1172
    %v1174 = vsel %vm684, %v1012, 0.0
    %1175 = vadd.xlane.f32.xlu0 %v1174
    %v1176 = vpop.xlane.xlu0 %1175
    %v1177 = vsel %vm684, %v1014, 0.0
    %1178 = vadd.xlane.f32.xlu0 %v1177
    %v1179 = vpop.xlane.xlu0 %1178
    %v1180 = vsel %vm684, %v1016, 0.0
    %1181 = vadd.xlane.f32.xlu0 %v1180
    %v1182 = vpop.xlane.xlu0 %1181
    %v1183 = vsel %vm684, %v1018, 0.0
    %1184 = vadd.xlane.f32.xlu0 %v1183
    %v1185 = vpop.xlane.xlu0 %1184
    %v1186 = vsel %vm684, %v1020, 0.0
    %1187 = vadd.xlane.f32.xlu0 %v1186
    %v1188 = vpop.xlane.xlu0 %1187
    %v1189 = vsel %vm684, %v1022, 0.0
    %1190 = vadd.xlane.f32.xlu0 %v1189
    %v1191 = vpop.xlane.xlu0 %1190
    %v1192 = vsel %vm684, %v1024, 0.0
    %1193 = vadd.xlane.f32.xlu0 %v1192
    %v1194 = vpop.xlane.xlu0 %1193
    %v1195 = vsel %vm684, %v1026, 0.0
    %1196 = vadd.xlane.f32.xlu0 %v1195
    %v1197 = vpop.xlane.xlu0 %1196
    %v1198 = vsel %vm684, %v1028, 0.0
    %1199 = vadd.xlane.f32.xlu0 %v1198
    %v1200 = vpop.xlane.xlu0 %1199
    %v1201 = vsel %vm684, %v1030, 0.0
    %1202 = vadd.xlane.f32.xlu0 %v1201
    %v1203 = vpop.xlane.xlu0 %1202
    %v1204 = vsel %vm684, %v1032, 0.0
    %1205 = vadd.xlane.f32.xlu0 %v1204
    %v1206 = vpop.xlane.xlu0 %1205
    %v1207 = vsel %vm684, %v1034, 0.0
    %1208 = vadd.xlane.f32.xlu0 %v1207
    %v1209 = vpop.xlane.xlu0 %1208
    %v1210 = vsel %vm684, %v1036, 0.0
    %1211 = vadd.xlane.f32.xlu0 %v1210
    %v1212 = vpop.xlane.xlu0 %1211
    %v1213 = vsel %vm684, %v1038, 0.0
    %1214 = vadd.xlane.f32.xlu0 %v1213
    %v1215 = vpop.xlane.xlu0 %1214
    %v1216 = vsel %vm684, %v1040, 0.0
    %1217 = vadd.xlane.f32.xlu0 %v1216
    %v1218 = vpop.xlane.xlu0 %1217
    %v1219 = vsel %vm684, %v1042, 0.0
    %1220 = vadd.xlane.f32.xlu0 %v1219
    %v1221 = vpop.xlane.xlu0 %1220
    %v1222 = vsel %vm684, %v1044, 0.0
    %1223 = vadd.xlane.f32.xlu0 %v1222
    %v1224 = vpop.xlane.xlu0 %1223
    %v1225 = vsel %vm684, %v1046, 0.0
    %1226 = vadd.xlane.f32.xlu0 %v1225
    %v1227 = vpop.xlane.xlu0 %1226
    %v1228 = vsel %vm684, %v1048, 0.0
    %1229 = vadd.xlane.f32.xlu0 %v1228
    %v1230 = vpop.xlane.xlu0 %1229
    %v1231 = vsel %vm684, %v1050, 0.0
    %1232 = vadd.xlane.f32.xlu0 %v1231
    %v1233 = vpop.xlane.xlu0 %1232
    %v1234 = vsel %vm684, %v1052, 0.0
    %1235 = vadd.xlane.f32.xlu0 %v1234
    %v1236 = vpop.xlane.xlu0 %1235
    %v1237 = vsel %vm684, %v1054, 0.0
    %1238 = vadd.xlane.f32.xlu0 %v1237
    %v1239 = vpop.xlane.xlu0 %1238
    %v1240 = vsel %vm684, %v1056, 0.0
    %1241 = vadd.xlane.f32.xlu0 %v1240
    %v1242 = vpop.xlane.xlu0 %1241
    %v1243 = vsel %vm684, %v1058, 0.0
    %1244 = vadd.xlane.f32.xlu0 %v1243
    %v1245 = vpop.xlane.xlu0 %1244
    %v1246 = vsel %vm684, %v1060, 0.0
    %1247 = vadd.xlane.f32.xlu0 %v1246
    %v1248 = vpop.xlane.xlu0 %1247
    %v1249 = vsel %vm684, %v1062, 0.0
    %1250 = vadd.xlane.f32.xlu0 %v1249
    %v1251 = vpop.xlane.xlu0 %1250
    %v1252 = vsel %vm684, %v1064, 0.0
    %1253 = vadd.xlane.f32.xlu0 %v1252
    %v1254 = vpop.xlane.xlu0 %1253
    %v1255 = vsel %vm684, %v1066, 0.0
    %1256 = vadd.xlane.f32.xlu0 %v1255
    %v1257 = vpop.xlane.xlu0 %1256
    %v1258 = vsel %vm684, %v1068, 0.0
    %1259 = vadd.xlane.f32.xlu0 %v1258
    %v1260 = vpop.xlane.xlu0 %1259
    %v1261 = vrcp.pop %v1071
    %v1262 = vmul.f32 %v942, %v1261
    %v1263 = vrcp.pop %v1074
    %v1264 = vmul.f32 %v944, %v1263
    %v1265 = vrcp.pop %v1077
    %v1266 = vmul.f32 %v946, %v1265
    %v1267 = vrcp.pop %v1080
    %v1268 = vmul.f32 %v948, %v1267
    %v1269 = vrcp.pop %v1083
    %v1270 = vmul.f32 %v950, %v1269
    %v1271 = vrcp.pop %v1086
    %v1272 = vmul.f32 %v952, %v1271
    %v1273 = vrcp.pop %v1089
    %v1274 = vmul.f32 %v954, %v1273
    %v1275 = vrcp.pop %v1092
    %v1276 = vmul.f32 %v956, %v1275
    %v1277 = vrcp.pop %v1095
    %v1278 = vmul.f32 %v958, %v1277
    %v1279 = vrcp.pop %v1098
    %v1280 = vmul.f32 %v960, %v1279
    %v1281 = vrcp.pop %v1101
    %v1282 = vmul.f32 %v962, %v1281
    %v1283 = vrcp.pop %v1104
    %v1284 = vmul.f32 %v964, %v1283
    %v1285 = vrcp.pop %v1107
    %v1286 = vmul.f32 %v966, %v1285
    %v1287 = vrcp.pop %v1110
    %v1288 = vmul.f32 %v968, %v1287
    %v1289 = vrcp.pop %v1113
    %v1290 = vmul.f32 %v970, %v1289
    %v1291 = vrcp.pop %v1116
    %v1292 = vmul.f32 %v972, %v1291
    %v1293 = vrcp.pop %v1119
    %v1294 = vmul.f32 %v974, %v1293
    %v1295 = vrcp.pop %v1122
    %v1296 = vmul.f32 %v976, %v1295
    %v1297 = vrcp.pop %v1125
    %v1298 = vmul.f32 %v978, %v1297
    %v1299 = vrcp.pop %v1128
    %v1300 = vmul.f32 %v980, %v1299
    %v1301 = vrcp.pop %v1131
    %v1302 = vmul.f32 %v982, %v1301
    %v1303 = vrcp.pop %v1134
    %v1304 = vmul.f32 %v984, %v1303
    %v1305 = vrcp.pop %v1137
    %v1306 = vmul.f32 %v986, %v1305
    %v1307 = vrcp.pop %v1140
    %v1308 = vmul.f32 %v988, %v1307
    %v1309 = vrcp.pop %v1143
    %v1310 = vmul.f32 %v990, %v1309
    %v1311 = vrcp.pop %v1146
    %v1312 = vmul.f32 %v992, %v1311
    %v1313 = vrcp.pop %v1149
    %v1314 = vmul.f32 %v994, %v1313
    %v1315 = vrcp.pop %v1152
    %v1316 = vmul.f32 %v996, %v1315
    %v1317 = vrcp.pop %v1155
    %v1318 = vmul.f32 %v998, %v1317
    %v1319 = vrcp.pop %v1158
    %v1320 = vmul.f32 %v1000, %v1319
    %v1321 = vrcp.pop %v1161
    %v1322 = vmul.f32 %v1002, %v1321
    %v1323 = vrcp.pop %v1164
    %v1324 = vmul.f32 %v1004, %v1323
    %v1325 = vrcp.pop %v1167
    %v1326 = vmul.f32 %v1006, %v1325
    %v1327 = vrcp.pop %v1170
    %v1328 = vmul.f32 %v1008, %v1327
    %v1329 = vrcp.pop %v1173
    %v1330 = vmul.f32 %v1010, %v1329
    %v1331 = vrcp.pop %v1176
    %v1332 = vmul.f32 %v1012, %v1331
    %v1333 = vrcp.pop %v1179
    %v1334 = vmul.f32 %v1014, %v1333
    %v1335 = vrcp.pop %v1182
    %v1336 = vmul.f32 %v1016, %v1335
    %v1337 = vrcp.pop %v1185
    %v1338 = vmul.f32 %v1018, %v1337
    %v1339 = vrcp.pop %v1188
    %v1340 = vmul.f32 %v1020, %v1339
    %v1341 = vrcp.pop %v1191
    %v1342 = vmul.f32 %v1022, %v1341
    %v1343 = vrcp.pop %v1194
    %v1344 = vmul.f32 %v1024, %v1343
    %v1345 = vrcp.pop %v1197
    %v1346 = vmul.f32 %v1026, %v1345
    %v1347 = vrcp.pop %v1200
    %v1348 = vmul.f32 %v1028, %v1347
    %v1349 = vrcp.pop %v1203
    %v1350 = vmul.f32 %v1030, %v1349
    %v1351 = vrcp.pop %v1206
    %v1352 = vmul.f32 %v1032, %v1351
    %v1353 = vrcp.pop %v1209
    %v1354 = vmul.f32 %v1034, %v1353
    %v1355 = vrcp.pop %v1212
    %v1356 = vmul.f32 %v1036, %v1355
    %v1357 = vrcp.pop %v1215
    %v1358 = vmul.f32 %v1038, %v1357
    %v1359 = vrcp.pop %v1218
    %v1360 = vmul.f32 %v1040, %v1359
    %v1361 = vrcp.pop %v1221
    %v1362 = vmul.f32 %v1042, %v1361
    %v1363 = vrcp.pop %v1224
    %v1364 = vmul.f32 %v1044, %v1363
    %v1365 = vrcp.pop %v1227
    %v1366 = vmul.f32 %v1046, %v1365
    %v1367 = vrcp.pop %v1230
    %v1368 = vmul.f32 %v1048, %v1367
    %v1369 = vrcp.pop %v1233
    %v1370 = vmul.f32 %v1050, %v1369
    %v1371 = vrcp.pop %v1236
    %v1372 = vmul.f32 %v1052, %v1371
    %v1373 = vrcp.pop %v1239
    %v1374 = vmul.f32 %v1054, %v1373
    %v1375 = vrcp.pop %v1242
    %v1376 = vmul.f32 %v1056, %v1375
    %v1377 = vrcp.pop %v1245
    %v1378 = vmul.f32 %v1058, %v1377
    %v1379 = vrcp.pop %v1248
    %v1380 = vmul.f32 %v1060, %v1379
    %v1381 = vrcp.pop %v1251
    %v1382 = vmul.f32 %v1062, %v1381
    %v1383 = vrcp.pop %v1254
    %v1384 = vmul.f32 %v1064, %v1383
    %v1385 = vrcp.pop %v1257
    %v1386 = vmul.f32 %v1066, %v1385
    %v1387 = vrcp.pop %v1260
    %v1388 = vmul.f32 %v1068, %v1387
    %v1389 = vlaneseq
    %v1390 = vand.u32 %v1389, 127
    %vm1391 = vcmp.eq.s32.totalorder %v1390, 0
    %v1392 = vsel %vm1391, -1.0, 1.0
    %v1393 = vmul.f32 %v366, %v1392
    %v1394 = vmul.f32 %v371, %v1392
    %v1395 = vmul.f32 %v376, %v1392
    %v1396 = vmul.f32 %v381, %v1392
    %v1397 = vmul.f32 %v386, %v1392
    %v1398 = vmul.f32 %v391, %v1392
    %v1399 = vmul.f32 %v396, %v1392
    %v1400 = vmul.f32 %v401, %v1392
    %v1401 = vmul.f32 %v406, %v1392
    %v1402 = vmul.f32 %v411, %v1392
    %v1403 = vmul.f32 %v416, %v1392
    %v1404 = vmul.f32 %v421, %v1392
    %v1405 = vmul.f32 %v426, %v1392
    %v1406 = vmul.f32 %v431, %v1392
    %v1407 = vmul.f32 %v436, %v1392
    %v1408 = vmul.f32 %v441, %v1392
    %v1409 = vmul.f32 %v446, %v1392
    %v1410 = vmul.f32 %v451, %v1392
    %v1411 = vmul.f32 %v456, %v1392
    %v1412 = vmul.f32 %v461, %v1392
    %v1413 = vmul.f32 %v466, %v1392
    %v1414 = vmul.f32 %v471, %v1392
    %v1415 = vmul.f32 %v476, %v1392
    %v1416 = vmul.f32 %v481, %v1392
    %v1417 = vmul.f32 %v486, %v1392
    %v1418 = vmul.f32 %v491, %v1392
    %v1419 = vmul.f32 %v496, %v1392
    %v1420 = vmul.f32 %v501, %v1392
    %v1421 = vmul.f32 %v506, %v1392
    %v1422 = vmul.f32 %v511, %v1392
    %v1423 = vmul.f32 %v516, %v1392
    %v1424 = vmul.f32 %v521, %v1392
    %v1425 = vmul.f32 %v526, %v1392
    %v1426 = vmul.f32 %v531, %v1392
    %v1427 = vmul.f32 %v536, %v1392
    %v1428 = vmul.f32 %v541, %v1392
    %v1429 = vmul.f32 %v546, %v1392
    %v1430 = vmul.f32 %v551, %v1392
    %v1431 = vmul.f32 %v556, %v1392
    %v1432 = vmul.f32 %v561, %v1392
    %v1433 = vmul.f32 %v566, %v1392
    %v1434 = vmul.f32 %v571, %v1392
    %v1435 = vmul.f32 %v576, %v1392
    %v1436 = vmul.f32 %v581, %v1392
    %v1437 = vmul.f32 %v586, %v1392
    %v1438 = vmul.f32 %v591, %v1392
    %v1439 = vmul.f32 %v596, %v1392
    %v1440 = vmul.f32 %v601, %v1392
    %v1441 = vmul.f32 %v606, %v1392
    %v1442 = vmul.f32 %v611, %v1392
    %v1443 = vmul.f32 %v616, %v1392
    %v1444 = vmul.f32 %v621, %v1392
    %v1445 = vmul.f32 %v626, %v1392
    %v1446 = vmul.f32 %v631, %v1392
    %v1447 = vmul.f32 %v636, %v1392
    %v1448 = vmul.f32 %v641, %v1392
    %v1449 = vmul.f32 %v646, %v1392
    %v1450 = vmul.f32 %v651, %v1392
    %v1451 = vmul.f32 %v656, %v1392
    %v1452 = vmul.f32 %v661, %v1392
    %v1453 = vmul.f32 %v666, %v1392
    %v1454 = vmul.f32 %v671, %v1392
    %v1455 = vmul.f32 %v676, %v1392
    %v1456 = vmul.f32 %v681, %v1392
    %v1457 = vsel %vm684, %v1393, 0.0
    %1458 = vadd.xlane.f32.xlu0 %v1457
    %v1459 = vpop.xlane.xlu0 %1458
    %v1460 = vsel %vm684, %v1394, 0.0
    %1461 = vadd.xlane.f32.xlu0 %v1460
    %v1462 = vpop.xlane.xlu0 %1461
    %v1463 = vsel %vm684, %v1395, 0.0
    %1464 = vadd.xlane.f32.xlu0 %v1463
    %v1465 = vpop.xlane.xlu0 %1464
    %v1466 = vsel %vm684, %v1396, 0.0
    %1467 = vadd.xlane.f32.xlu0 %v1466
    %v1468 = vpop.xlane.xlu0 %1467
    %v1469 = vsel %vm684, %v1397, 0.0
    %1470 = vadd.xlane.f32.xlu0 %v1469
    %v1471 = vpop.xlane.xlu0 %1470
    %v1472 = vsel %vm684, %v1398, 0.0
    %1473 = vadd.xlane.f32.xlu0 %v1472
    %v1474 = vpop.xlane.xlu0 %1473
    %v1475 = vsel %vm684, %v1399, 0.0
    %1476 = vadd.xlane.f32.xlu0 %v1475
    %v1477 = vpop.xlane.xlu0 %1476
    %v1478 = vsel %vm684, %v1400, 0.0
    %1479 = vadd.xlane.f32.xlu0 %v1478
    %v1480 = vpop.xlane.xlu0 %1479
    %v1481 = vsel %vm684, %v1401, 0.0
    %1482 = vadd.xlane.f32.xlu0 %v1481
    %v1483 = vpop.xlane.xlu0 %1482
    %v1484 = vsel %vm684, %v1402, 0.0
    %1485 = vadd.xlane.f32.xlu0 %v1484
    %v1486 = vpop.xlane.xlu0 %1485
    %v1487 = vsel %vm684, %v1403, 0.0
    %1488 = vadd.xlane.f32.xlu0 %v1487
    %v1489 = vpop.xlane.xlu0 %1488
    %v1490 = vsel %vm684, %v1404, 0.0
    %1491 = vadd.xlane.f32.xlu0 %v1490
    %v1492 = vpop.xlane.xlu0 %1491
    %v1493 = vsel %vm684, %v1405, 0.0
    %1494 = vadd.xlane.f32.xlu0 %v1493
    %v1495 = vpop.xlane.xlu0 %1494
    %v1496 = vsel %vm684, %v1406, 0.0
    %1497 = vadd.xlane.f32.xlu0 %v1496
    %v1498 = vpop.xlane.xlu0 %1497
    %v1499 = vsel %vm684, %v1407, 0.0
    %1500 = vadd.xlane.f32.xlu0 %v1499
    %v1501 = vpop.xlane.xlu0 %1500
    %v1502 = vsel %vm684, %v1408, 0.0
    %1503 = vadd.xlane.f32.xlu0 %v1502
    %v1504 = vpop.xlane.xlu0 %1503
    %v1505 = vsel %vm684, %v1409, 0.0
    %1506 = vadd.xlane.f32.xlu0 %v1505
    %v1507 = vpop.xlane.xlu0 %1506
    %v1508 = vsel %vm684, %v1410, 0.0
    %1509 = vadd.xlane.f32.xlu0 %v1508
    %v1510 = vpop.xlane.xlu0 %1509
    %v1511 = vsel %vm684, %v1411, 0.0
    %1512 = vadd.xlane.f32.xlu0 %v1511
    %v1513 = vpop.xlane.xlu0 %1512
    %v1514 = vsel %vm684, %v1412, 0.0
    %1515 = vadd.xlane.f32.xlu0 %v1514
    %v1516 = vpop.xlane.xlu0 %1515
    %v1517 = vsel %vm684, %v1413, 0.0
    %1518 = vadd.xlane.f32.xlu0 %v1517
    %v1519 = vpop.xlane.xlu0 %1518
    %v1520 = vsel %vm684, %v1414, 0.0
    %1521 = vadd.xlane.f32.xlu0 %v1520
    %v1522 = vpop.xlane.xlu0 %1521
    %v1523 = vsel %vm684, %v1415, 0.0
    %1524 = vadd.xlane.f32.xlu0 %v1523
    %v1525 = vpop.xlane.xlu0 %1524
    %v1526 = vsel %vm684, %v1416, 0.0
    %1527 = vadd.xlane.f32.xlu0 %v1526
    %v1528 = vpop.xlane.xlu0 %1527
    %v1529 = vsel %vm684, %v1417, 0.0
    %1530 = vadd.xlane.f32.xlu0 %v1529
    %v1531 = vpop.xlane.xlu0 %1530
    %v1532 = vsel %vm684, %v1418, 0.0
    %1533 = vadd.xlane.f32.xlu0 %v1532
    %v1534 = vpop.xlane.xlu0 %1533
    %v1535 = vsel %vm684, %v1419, 0.0
    %1536 = vadd.xlane.f32.xlu0 %v1535
    %v1537 = vpop.xlane.xlu0 %1536
    %v1538 = vsel %vm684, %v1420, 0.0
    %1539 = vadd.xlane.f32.xlu0 %v1538
    %v1540 = vpop.xlane.xlu0 %1539
    %v1541 = vsel %vm684, %v1421, 0.0
    %1542 = vadd.xlane.f32.xlu0 %v1541
    %v1543 = vpop.xlane.xlu0 %1542
    %v1544 = vsel %vm684, %v1422, 0.0
    %1545 = vadd.xlane.f32.xlu0 %v1544
    %v1546 = vpop.xlane.xlu0 %1545
    %v1547 = vsel %vm684, %v1423, 0.0
    %1548 = vadd.xlane.f32.xlu0 %v1547
    %v1549 = vpop.xlane.xlu0 %1548
    %v1550 = vsel %vm684, %v1424, 0.0
    %1551 = vadd.xlane.f32.xlu0 %v1550
    %v1552 = vpop.xlane.xlu0 %1551
    %v1553 = vsel %vm684, %v1425, 0.0
    %1554 = vadd.xlane.f32.xlu0 %v1553
    %v1555 = vpop.xlane.xlu0 %1554
    %v1556 = vsel %vm684, %v1426, 0.0
    %1557 = vadd.xlane.f32.xlu0 %v1556
    %v1558 = vpop.xlane.xlu0 %1557
    %v1559 = vsel %vm684, %v1427, 0.0
    %1560 = vadd.xlane.f32.xlu0 %v1559
    %v1561 = vpop.xlane.xlu0 %1560
    %v1562 = vsel %vm684, %v1428, 0.0
    %1563 = vadd.xlane.f32.xlu0 %v1562
    %v1564 = vpop.xlane.xlu0 %1563
    %v1565 = vsel %vm684, %v1429, 0.0
    %1566 = vadd.xlane.f32.xlu0 %v1565
    %v1567 = vpop.xlane.xlu0 %1566
    %v1568 = vsel %vm684, %v1430, 0.0
    %1569 = vadd.xlane.f32.xlu0 %v1568
    %v1570 = vpop.xlane.xlu0 %1569
    %v1571 = vsel %vm684, %v1431, 0.0
    %1572 = vadd.xlane.f32.xlu0 %v1571
    %v1573 = vpop.xlane.xlu0 %1572
    %v1574 = vsel %vm684, %v1432, 0.0
    %1575 = vadd.xlane.f32.xlu0 %v1574
    %v1576 = vpop.xlane.xlu0 %1575
    %v1577 = vsel %vm684, %v1433, 0.0
    %1578 = vadd.xlane.f32.xlu0 %v1577
    %v1579 = vpop.xlane.xlu0 %1578
    %v1580 = vsel %vm684, %v1434, 0.0
    %1581 = vadd.xlane.f32.xlu0 %v1580
    %v1582 = vpop.xlane.xlu0 %1581
    %v1583 = vsel %vm684, %v1435, 0.0
    %1584 = vadd.xlane.f32.xlu0 %v1583
    %v1585 = vpop.xlane.xlu0 %1584
    %v1586 = vsel %vm684, %v1436, 0.0
    %1587 = vadd.xlane.f32.xlu0 %v1586
    %v1588 = vpop.xlane.xlu0 %1587
    %v1589 = vsel %vm684, %v1437, 0.0
    %1590 = vadd.xlane.f32.xlu0 %v1589
    %v1591 = vpop.xlane.xlu0 %1590
    %v1592 = vsel %vm684, %v1438, 0.0
    %1593 = vadd.xlane.f32.xlu0 %v1592
    %v1594 = vpop.xlane.xlu0 %1593
    %v1595 = vsel %vm684, %v1439, 0.0
    %1596 = vadd.xlane.f32.xlu0 %v1595
    %v1597 = vpop.xlane.xlu0 %1596
    %v1598 = vsel %vm684, %v1440, 0.0
    %1599 = vadd.xlane.f32.xlu0 %v1598
    %v1600 = vpop.xlane.xlu0 %1599
    %v1601 = vsel %vm684, %v1441, 0.0
    %1602 = vadd.xlane.f32.xlu0 %v1601
    %v1603 = vpop.xlane.xlu0 %1602
    %v1604 = vsel %vm684, %v1442, 0.0
    %1605 = vadd.xlane.f32.xlu0 %v1604
    %v1606 = vpop.xlane.xlu0 %1605
    %v1607 = vsel %vm684, %v1443, 0.0
    %1608 = vadd.xlane.f32.xlu0 %v1607
    %v1609 = vpop.xlane.xlu0 %1608
    %v1610 = vsel %vm684, %v1444, 0.0
    %1611 = vadd.xlane.f32.xlu0 %v1610
    %v1612 = vpop.xlane.xlu0 %1611
    %v1613 = vsel %vm684, %v1445, 0.0
    %1614 = vadd.xlane.f32.xlu0 %v1613
    %v1615 = vpop.xlane.xlu0 %1614
    %v1616 = vsel %vm684, %v1446, 0.0
    %1617 = vadd.xlane.f32.xlu0 %v1616
    %v1618 = vpop.xlane.xlu0 %1617
    %v1619 = vsel %vm684, %v1447, 0.0
    %1620 = vadd.xlane.f32.xlu0 %v1619
    %v1621 = vpop.xlane.xlu0 %1620
    %v1622 = vsel %vm684, %v1448, 0.0
    %1623 = vadd.xlane.f32.xlu0 %v1622
    %v1624 = vpop.xlane.xlu0 %1623
    %v1625 = vsel %vm684, %v1449, 0.0
    %1626 = vadd.xlane.f32.xlu0 %v1625
    %v1627 = vpop.xlane.xlu0 %1626
    %v1628 = vsel %vm684, %v1450, 0.0
    %1629 = vadd.xlane.f32.xlu0 %v1628
    %v1630 = vpop.xlane.xlu0 %1629
    %v1631 = vsel %vm684, %v1451, 0.0
    %1632 = vadd.xlane.f32.xlu0 %v1631
    %v1633 = vpop.xlane.xlu0 %1632
    %v1634 = vsel %vm684, %v1452, 0.0
    %1635 = vadd.xlane.f32.xlu0 %v1634
    %v1636 = vpop.xlane.xlu0 %1635
    %v1637 = vsel %vm684, %v1453, 0.0
    %1638 = vadd.xlane.f32.xlu0 %v1637
    %v1639 = vpop.xlane.xlu0 %1638
    %v1640 = vsel %vm684, %v1454, 0.0
    %1641 = vadd.xlane.f32.xlu0 %v1640
    %v1642 = vpop.xlane.xlu0 %1641
    %v1643 = vsel %vm684, %v1455, 0.0
    %1644 = vadd.xlane.f32.xlu0 %v1643
    %v1645 = vpop.xlane.xlu0 %1644
    %v1646 = vsel %vm684, %v1456, 0.0
    %1647 = vadd.xlane.f32.xlu0 %v1646
    %v1648 = vpop.xlane.xlu0 %1647
    %v1649 = vsub.f32 0.0, %v1459
    %v1650 = vsub.f32 0.0, %v1462
    %v1651 = vsub.f32 0.0, %v1465
    %v1652 = vsub.f32 0.0, %v1468
    %v1653 = vsub.f32 0.0, %v1471
    %v1654 = vsub.f32 0.0, %v1474
    %v1655 = vsub.f32 0.0, %v1477
    %v1656 = vsub.f32 0.0, %v1480
    %v1657 = vsub.f32 0.0, %v1483
    %v1658 = vsub.f32 0.0, %v1486
    %v1659 = vsub.f32 0.0, %v1489
    %v1660 = vsub.f32 0.0, %v1492
    %v1661 = vsub.f32 0.0, %v1495
    %v1662 = vsub.f32 0.0, %v1498
    %v1663 = vsub.f32 0.0, %v1501
    %v1664 = vsub.f32 0.0, %v1504
    %v1665 = vsub.f32 0.0, %v1507
    %v1666 = vsub.f32 0.0, %v1510
    %v1667 = vsub.f32 0.0, %v1513
    %v1668 = vsub.f32 0.0, %v1516
    %v1669 = vsub.f32 0.0, %v1519
    %v1670 = vsub.f32 0.0, %v1522
    %v1671 = vsub.f32 0.0, %v1525
    %v1672 = vsub.f32 0.0, %v1528
    %v1673 = vsub.f32 0.0, %v1531
    %v1674 = vsub.f32 0.0, %v1534
    %v1675 = vsub.f32 0.0, %v1537
    %v1676 = vsub.f32 0.0, %v1540
    %v1677 = vsub.f32 0.0, %v1543
    %v1678 = vsub.f32 0.0, %v1546
    %v1679 = vsub.f32 0.0, %v1549
    %v1680 = vsub.f32 0.0, %v1552
    %v1681 = vsub.f32 0.0, %v1555
    %v1682 = vsub.f32 0.0, %v1558
    %v1683 = vsub.f32 0.0, %v1561
    %v1684 = vsub.f32 0.0, %v1564
    %v1685 = vsub.f32 0.0, %v1567
    %v1686 = vsub.f32 0.0, %v1570
    %v1687 = vsub.f32 0.0, %v1573
    %v1688 = vsub.f32 0.0, %v1576
    %v1689 = vsub.f32 0.0, %v1579
    %v1690 = vsub.f32 0.0, %v1582
    %v1691 = vsub.f32 0.0, %v1585
    %v1692 = vsub.f32 0.0, %v1588
    %v1693 = vsub.f32 0.0, %v1591
    %v1694 = vsub.f32 0.0, %v1594
    %v1695 = vsub.f32 0.0, %v1597
    %v1696 = vsub.f32 0.0, %v1600
    %v1697 = vsub.f32 0.0, %v1603
    %v1698 = vsub.f32 0.0, %v1606
    %v1699 = vsub.f32 0.0, %v1609
    %v1700 = vsub.f32 0.0, %v1612
    %v1701 = vsub.f32 0.0, %v1615
    %v1702 = vsub.f32 0.0, %v1618
    %v1703 = vsub.f32 0.0, %v1621
    %v1704 = vsub.f32 0.0, %v1624
    %v1705 = vsub.f32 0.0, %v1627
    %v1706 = vsub.f32 0.0, %v1630
    %v1707 = vsub.f32 0.0, %v1633
    %v1708 = vsub.f32 0.0, %v1636
    %v1709 = vsub.f32 0.0, %v1639
    %v1710 = vsub.f32 0.0, %v1642
    %v1711 = vsub.f32 0.0, %v1645
    %v1712 = vsub.f32 0.0, %v1648
    %v1713 = vmul.f32 %v1649, 1.442695
    %v1714 = vpow.pop %v1713
    %v1715 = vmul.f32 %v1650, 1.442695
    %v1716 = vpow.pop %v1715
    %v1717 = vmul.f32 %v1651, 1.442695
    %v1718 = vpow.pop %v1717
    %v1719 = vmul.f32 %v1652, 1.442695
    %v1720 = vpow.pop %v1719
    %v1721 = vmul.f32 %v1653, 1.442695
    %v1722 = vpow.pop %v1721
    %v1723 = vmul.f32 %v1654, 1.442695
    %v1724 = vpow.pop %v1723
    %v1725 = vmul.f32 %v1655, 1.442695
    %v1726 = vpow.pop %v1725
    %v1727 = vmul.f32 %v1656, 1.442695
    %v1728 = vpow.pop %v1727
    %v1729 = vmul.f32 %v1657, 1.442695
    %v1730 = vpow.pop %v1729
    %v1731 = vmul.f32 %v1658, 1.442695
    %v1732 = vpow.pop %v1731
    %v1733 = vmul.f32 %v1659, 1.442695
    %v1734 = vpow.pop %v1733
    %v1735 = vmul.f32 %v1660, 1.442695
    %v1736 = vpow.pop %v1735
    %v1737 = vmul.f32 %v1661, 1.442695
    %v1738 = vpow.pop %v1737
    %v1739 = vmul.f32 %v1662, 1.442695
    %v1740 = vpow.pop %v1739
    %v1741 = vmul.f32 %v1663, 1.442695
    %v1742 = vpow.pop %v1741
    %v1743 = vmul.f32 %v1664, 1.442695
    %v1744 = vpow.pop %v1743
    %v1745 = vmul.f32 %v1665, 1.442695
    %v1746 = vpow.pop %v1745
    %v1747 = vmul.f32 %v1666, 1.442695
    %v1748 = vpow.pop %v1747
    %v1749 = vmul.f32 %v1667, 1.442695
    %v1750 = vpow.pop %v1749
    %v1751 = vmul.f32 %v1668, 1.442695
    %v1752 = vpow.pop %v1751
    %v1753 = vmul.f32 %v1669, 1.442695
    %v1754 = vpow.pop %v1753
    %v1755 = vmul.f32 %v1670, 1.442695
    %v1756 = vpow.pop %v1755
    %v1757 = vmul.f32 %v1671, 1.442695
    %v1758 = vpow.pop %v1757
    %v1759 = vmul.f32 %v1672, 1.442695
    %v1760 = vpow.pop %v1759
    %v1761 = vmul.f32 %v1673, 1.442695
    %v1762 = vpow.pop %v1761
    %v1763 = vmul.f32 %v1674, 1.442695
    %v1764 = vpow.pop %v1763
    %v1765 = vmul.f32 %v1675, 1.442695
    %v1766 = vpow.pop %v1765
    %v1767 = vmul.f32 %v1676, 1.442695
    %v1768 = vpow.pop %v1767
    %v1769 = vmul.f32 %v1677, 1.442695
    %v1770 = vpow.pop %v1769
    %v1771 = vmul.f32 %v1678, 1.442695
    %v1772 = vpow.pop %v1771
    %v1773 = vmul.f32 %v1679, 1.442695
    %v1774 = vpow.pop %v1773
    %v1775 = vmul.f32 %v1680, 1.442695
    %v1776 = vpow.pop %v1775
    %v1777 = vmul.f32 %v1681, 1.442695
    %v1778 = vpow.pop %v1777
    %v1779 = vmul.f32 %v1682, 1.442695
    %v1780 = vpow.pop %v1779
    %v1781 = vmul.f32 %v1683, 1.442695
    %v1782 = vpow.pop %v1781
    %v1783 = vmul.f32 %v1684, 1.442695
    %v1784 = vpow.pop %v1783
    %v1785 = vmul.f32 %v1685, 1.442695
    %v1786 = vpow.pop %v1785
    %v1787 = vmul.f32 %v1686, 1.442695
    %v1788 = vpow.pop %v1787
    %v1789 = vmul.f32 %v1687, 1.442695
    %v1790 = vpow.pop %v1789
    %v1791 = vmul.f32 %v1688, 1.442695
    %v1792 = vpow.pop %v1791
    %v1793 = vmul.f32 %v1689, 1.442695
    %v1794 = vpow.pop %v1793
    %v1795 = vmul.f32 %v1690, 1.442695
    %v1796 = vpow.pop %v1795
    %v1797 = vmul.f32 %v1691, 1.442695
    %v1798 = vpow.pop %v1797
    %v1799 = vmul.f32 %v1692, 1.442695
    %v1800 = vpow.pop %v1799
    %v1801 = vmul.f32 %v1693, 1.442695
    %v1802 = vpow.pop %v1801
    %v1803 = vmul.f32 %v1694, 1.442695
    %v1804 = vpow.pop %v1803
    %v1805 = vmul.f32 %v1695, 1.442695
    %v1806 = vpow.pop %v1805
    %v1807 = vmul.f32 %v1696, 1.442695
    %v1808 = vpow.pop %v1807
    %v1809 = vmul.f32 %v1697, 1.442695
    %v1810 = vpow.pop %v1809
    %v1811 = vmul.f32 %v1698, 1.442695
    %v1812 = vpow.pop %v1811
    %v1813 = vmul.f32 %v1699, 1.442695
    %v1814 = vpow.pop %v1813
    %v1815 = vmul.f32 %v1700, 1.442695
    %v1816 = vpow.pop %v1815
    %v1817 = vmul.f32 %v1701, 1.442695
    %v1818 = vpow.pop %v1817
    %v1819 = vmul.f32 %v1702, 1.442695
    %v1820 = vpow.pop %v1819
    %v1821 = vmul.f32 %v1703, 1.442695
    %v1822 = vpow.pop %v1821
    %v1823 = vmul.f32 %v1704, 1.442695
    %v1824 = vpow.pop %v1823
    %v1825 = vmul.f32 %v1705, 1.442695
    %v1826 = vpow.pop %v1825
    %v1827 = vmul.f32 %v1706, 1.442695
    %v1828 = vpow.pop %v1827
    %v1829 = vmul.f32 %v1707, 1.442695
    %v1830 = vpow.pop %v1829
    %v1831 = vmul.f32 %v1708, 1.442695
    %v1832 = vpow.pop %v1831
    %v1833 = vmul.f32 %v1709, 1.442695
    %v1834 = vpow.pop %v1833
    %v1835 = vmul.f32 %v1710, 1.442695
    %v1836 = vpow.pop %v1835
    %v1837 = vmul.f32 %v1711, 1.442695
    %v1838 = vpow.pop %v1837
    %v1839 = vmul.f32 %v1712, 1.442695
    %v1840 = vpow.pop %v1839
    %v1841 = vadd.f32 %v1714, 1.0
    %v1842 = vadd.f32 %v1716, 1.0
    %v1843 = vadd.f32 %v1718, 1.0
    %v1844 = vadd.f32 %v1720, 1.0
    %v1845 = vadd.f32 %v1722, 1.0
    %v1846 = vadd.f32 %v1724, 1.0
    %v1847 = vadd.f32 %v1726, 1.0
    %v1848 = vadd.f32 %v1728, 1.0
    %v1849 = vadd.f32 %v1730, 1.0
    %v1850 = vadd.f32 %v1732, 1.0
    %v1851 = vadd.f32 %v1734, 1.0
    %v1852 = vadd.f32 %v1736, 1.0
    %v1853 = vadd.f32 %v1738, 1.0
    %v1854 = vadd.f32 %v1740, 1.0
    %v1855 = vadd.f32 %v1742, 1.0
    %v1856 = vadd.f32 %v1744, 1.0
    %v1857 = vadd.f32 %v1746, 1.0
    %v1858 = vadd.f32 %v1748, 1.0
    %v1859 = vadd.f32 %v1750, 1.0
    %v1860 = vadd.f32 %v1752, 1.0
    %v1861 = vadd.f32 %v1754, 1.0
    %v1862 = vadd.f32 %v1756, 1.0
    %v1863 = vadd.f32 %v1758, 1.0
    %v1864 = vadd.f32 %v1760, 1.0
    %v1865 = vadd.f32 %v1762, 1.0
    %v1866 = vadd.f32 %v1764, 1.0
    %v1867 = vadd.f32 %v1766, 1.0
    %v1868 = vadd.f32 %v1768, 1.0
    %v1869 = vadd.f32 %v1770, 1.0
    %v1870 = vadd.f32 %v1772, 1.0
    %v1871 = vadd.f32 %v1774, 1.0
    %v1872 = vadd.f32 %v1776, 1.0
    %v1873 = vadd.f32 %v1778, 1.0
    %v1874 = vadd.f32 %v1780, 1.0
    %v1875 = vadd.f32 %v1782, 1.0
    %v1876 = vadd.f32 %v1784, 1.0
    %v1877 = vadd.f32 %v1786, 1.0
    %v1878 = vadd.f32 %v1788, 1.0
    %v1879 = vadd.f32 %v1790, 1.0
    %v1880 = vadd.f32 %v1792, 1.0
    %v1881 = vadd.f32 %v1794, 1.0
    %v1882 = vadd.f32 %v1796, 1.0
    %v1883 = vadd.f32 %v1798, 1.0
    %v1884 = vadd.f32 %v1800, 1.0
    %v1885 = vadd.f32 %v1802, 1.0
    %v1886 = vadd.f32 %v1804, 1.0
    %v1887 = vadd.f32 %v1806, 1.0
    %v1888 = vadd.f32 %v1808, 1.0
    %v1889 = vadd.f32 %v1810, 1.0
    %v1890 = vadd.f32 %v1812, 1.0
    %v1891 = vadd.f32 %v1814, 1.0
    %v1892 = vadd.f32 %v1816, 1.0
    %v1893 = vadd.f32 %v1818, 1.0
    %v1894 = vadd.f32 %v1820, 1.0
    %v1895 = vadd.f32 %v1822, 1.0
    %v1896 = vadd.f32 %v1824, 1.0
    %v1897 = vadd.f32 %v1826, 1.0
    %v1898 = vadd.f32 %v1828, 1.0
    %v1899 = vadd.f32 %v1830, 1.0
    %v1900 = vadd.f32 %v1832, 1.0
    %v1901 = vadd.f32 %v1834, 1.0
    %v1902 = vadd.f32 %v1836, 1.0
    %v1903 = vadd.f32 %v1838, 1.0
    %v1904 = vadd.f32 %v1840, 1.0
    %v1905 = vrcp.pop %v1841
    %v1906 = vmul.f32 1.0, %v1905
    %v1907 = vrcp.pop %v1842
    %v1908 = vmul.f32 1.0, %v1907
    %v1909 = vrcp.pop %v1843
    %v1910 = vmul.f32 1.0, %v1909
    %v1911 = vrcp.pop %v1844
    %v1912 = vmul.f32 1.0, %v1911
    %v1913 = vrcp.pop %v1845
    %v1914 = vmul.f32 1.0, %v1913
    %v1915 = vrcp.pop %v1846
    %v1916 = vmul.f32 1.0, %v1915
    %v1917 = vrcp.pop %v1847
    %v1918 = vmul.f32 1.0, %v1917
    %v1919 = vrcp.pop %v1848
    %v1920 = vmul.f32 1.0, %v1919
    %v1921 = vrcp.pop %v1849
    %v1922 = vmul.f32 1.0, %v1921
    %v1923 = vrcp.pop %v1850
    %v1924 = vmul.f32 1.0, %v1923
    %v1925 = vrcp.pop %v1851
    %v1926 = vmul.f32 1.0, %v1925
    %v1927 = vrcp.pop %v1852
    %v1928 = vmul.f32 1.0, %v1927
    %v1929 = vrcp.pop %v1853
    %v1930 = vmul.f32 1.0, %v1929
    %v1931 = vrcp.pop %v1854
    %v1932 = vmul.f32 1.0, %v1931
    %v1933 = vrcp.pop %v1855
    %v1934 = vmul.f32 1.0, %v1933
    %v1935 = vrcp.pop %v1856
    %v1936 = vmul.f32 1.0, %v1935
    %v1937 = vrcp.pop %v1857
    %v1938 = vmul.f32 1.0, %v1937
    %v1939 = vrcp.pop %v1858
    %v1940 = vmul.f32 1.0, %v1939
    %v1941 = vrcp.pop %v1859
    %v1942 = vmul.f32 1.0, %v1941
    %v1943 = vrcp.pop %v1860
    %v1944 = vmul.f32 1.0, %v1943
    %v1945 = vrcp.pop %v1861
    %v1946 = vmul.f32 1.0, %v1945
    %v1947 = vrcp.pop %v1862
    %v1948 = vmul.f32 1.0, %v1947
    %v1949 = vrcp.pop %v1863
    %v1950 = vmul.f32 1.0, %v1949
    %v1951 = vrcp.pop %v1864
    %v1952 = vmul.f32 1.0, %v1951
    %v1953 = vrcp.pop %v1865
    %v1954 = vmul.f32 1.0, %v1953
    %v1955 = vrcp.pop %v1866
    %v1956 = vmul.f32 1.0, %v1955
    %v1957 = vrcp.pop %v1867
    %v1958 = vmul.f32 1.0, %v1957
    %v1959 = vrcp.pop %v1868
    %v1960 = vmul.f32 1.0, %v1959
    %v1961 = vrcp.pop %v1869
    %v1962 = vmul.f32 1.0, %v1961
    %v1963 = vrcp.pop %v1870
    %v1964 = vmul.f32 1.0, %v1963
    %v1965 = vrcp.pop %v1871
    %v1966 = vmul.f32 1.0, %v1965
    %v1967 = vrcp.pop %v1872
    %v1968 = vmul.f32 1.0, %v1967
    %v1969 = vrcp.pop %v1873
    %v1970 = vmul.f32 1.0, %v1969
    %v1971 = vrcp.pop %v1874
    %v1972 = vmul.f32 1.0, %v1971
    %v1973 = vrcp.pop %v1875
    %v1974 = vmul.f32 1.0, %v1973
    %v1975 = vrcp.pop %v1876
    %v1976 = vmul.f32 1.0, %v1975
    %v1977 = vrcp.pop %v1877
    %v1978 = vmul.f32 1.0, %v1977
    %v1979 = vrcp.pop %v1878
    %v1980 = vmul.f32 1.0, %v1979
    %v1981 = vrcp.pop %v1879
    %v1982 = vmul.f32 1.0, %v1981
    %v1983 = vrcp.pop %v1880
    %v1984 = vmul.f32 1.0, %v1983
    %v1985 = vrcp.pop %v1881
    %v1986 = vmul.f32 1.0, %v1985
    %v1987 = vrcp.pop %v1882
    %v1988 = vmul.f32 1.0, %v1987
    %v1989 = vrcp.pop %v1883
    %v1990 = vmul.f32 1.0, %v1989
    %v1991 = vrcp.pop %v1884
    %v1992 = vmul.f32 1.0, %v1991
    %v1993 = vrcp.pop %v1885
    %v1994 = vmul.f32 1.0, %v1993
    %v1995 = vrcp.pop %v1886
    %v1996 = vmul.f32 1.0, %v1995
    %v1997 = vrcp.pop %v1887
    %v1998 = vmul.f32 1.0, %v1997
    %v1999 = vrcp.pop %v1888
    %v2000 = vmul.f32 1.0, %v1999
    %v2001 = vrcp.pop %v1889
    %v2002 = vmul.f32 1.0, %v2001
    %v2003 = vrcp.pop %v1890
    %v2004 = vmul.f32 1.0, %v2003
    %v2005 = vrcp.pop %v1891
    %v2006 = vmul.f32 1.0, %v2005
    %v2007 = vrcp.pop %v1892
    %v2008 = vmul.f32 1.0, %v2007
    %v2009 = vrcp.pop %v1893
    %v2010 = vmul.f32 1.0, %v2009
    %v2011 = vrcp.pop %v1894
    %v2012 = vmul.f32 1.0, %v2011
    %v2013 = vrcp.pop %v1895
    %v2014 = vmul.f32 1.0, %v2013
    %v2015 = vrcp.pop %v1896
    %v2016 = vmul.f32 1.0, %v2015
    %v2017 = vrcp.pop %v1897
    %v2018 = vmul.f32 1.0, %v2017
    %v2019 = vrcp.pop %v1898
    %v2020 = vmul.f32 1.0, %v2019
    %v2021 = vrcp.pop %v1899
    %v2022 = vmul.f32 1.0, %v2021
    %v2023 = vrcp.pop %v1900
    %v2024 = vmul.f32 1.0, %v2023
    %v2025 = vrcp.pop %v1901
    %v2026 = vmul.f32 1.0, %v2025
    %v2027 = vrcp.pop %v1902
    %v2028 = vmul.f32 1.0, %v2027
    %v2029 = vrcp.pop %v1903
    %v2030 = vmul.f32 1.0, %v2029
    %v2031 = vrcp.pop %v1904
    %v2032 = vmul.f32 1.0, %v2031
    %vm2033 = vcmask 7168
    %v2034 = vsel %vm2033, %v1906, 0.0
    %v2035 = vsel %vm2033, %v1908, 0.0
    %v2036 = vadd.f32 %v2034, %v2035
    %v2037 = vsel %vm2033, %v1910, 0.0
    %v2038 = vadd.f32 %v2036, %v2037
    %v2039 = vsel %vm2033, %v1912, 0.0
    %v2040 = vadd.f32 %v2038, %v2039
    %v2041 = vsel %vm2033, %v1914, 0.0
    %v2042 = vadd.f32 %v2040, %v2041
    %v2043 = vsel %vm2033, %v1916, 0.0
    %v2044 = vadd.f32 %v2042, %v2043
    %v2045 = vsel %vm2033, %v1918, 0.0
    %v2046 = vadd.f32 %v2044, %v2045
    %v2047 = vsel %vm2033, %v1920, 0.0
    %v2048 = vadd.f32 %v2046, %v2047
    %v2049 = vsel %vm2033, %v1922, 0.0
    %v2050 = vadd.f32 %v2048, %v2049
    %v2051 = vsel %vm2033, %v1924, 0.0
    %v2052 = vadd.f32 %v2050, %v2051
    %v2053 = vsel %vm2033, %v1926, 0.0
    %v2054 = vadd.f32 %v2052, %v2053
    %v2055 = vsel %vm2033, %v1928, 0.0
    %v2056 = vadd.f32 %v2054, %v2055
    %v2057 = vsel %vm2033, %v1930, 0.0
    %v2058 = vadd.f32 %v2056, %v2057
    %v2059 = vsel %vm2033, %v1932, 0.0
    %v2060 = vadd.f32 %v2058, %v2059
    %v2061 = vsel %vm2033, %v1934, 0.0
    %v2062 = vadd.f32 %v2060, %v2061
    %v2063 = vsel %vm2033, %v1936, 0.0
    %v2064 = vadd.f32 %v2062, %v2063
    %v2065 = vsel %vm2033, %v1938, 0.0
    %v2066 = vadd.f32 %v2064, %v2065
    %v2067 = vsel %vm2033, %v1940, 0.0
    %v2068 = vadd.f32 %v2066, %v2067
    %v2069 = vsel %vm2033, %v1942, 0.0
    %v2070 = vadd.f32 %v2068, %v2069
    %v2071 = vsel %vm2033, %v1944, 0.0
    %v2072 = vadd.f32 %v2070, %v2071
    %v2073 = vsel %vm2033, %v1946, 0.0
    %v2074 = vadd.f32 %v2072, %v2073
    %v2075 = vsel %vm2033, %v1948, 0.0
    %v2076 = vadd.f32 %v2074, %v2075
    %v2077 = vsel %vm2033, %v1950, 0.0
    %v2078 = vadd.f32 %v2076, %v2077
    %v2079 = vsel %vm2033, %v1952, 0.0
    %v2080 = vadd.f32 %v2078, %v2079
    %v2081 = vsel %vm2033, %v1954, 0.0
    %v2082 = vadd.f32 %v2080, %v2081
    %v2083 = vsel %vm2033, %v1956, 0.0
    %v2084 = vadd.f32 %v2082, %v2083
    %v2085 = vsel %vm2033, %v1958, 0.0
    %v2086 = vadd.f32 %v2084, %v2085
    %v2087 = vsel %vm2033, %v1960, 0.0
    %v2088 = vadd.f32 %v2086, %v2087
    %v2089 = vsel %vm2033, %v1962, 0.0
    %v2090 = vadd.f32 %v2088, %v2089
    %v2091 = vsel %vm2033, %v1964, 0.0
    %v2092 = vadd.f32 %v2090, %v2091
    %v2093 = vsel %vm2033, %v1966, 0.0
    %v2094 = vadd.f32 %v2092, %v2093
    %v2095 = vsel %vm2033, %v1968, 0.0
    %v2096 = vadd.f32 %v2094, %v2095
    %2097 = vadd.xlane.f32.xlu0 %v2096
    %v2098 = vpop.xlane.xlu0 %2097
    %v2099 = vrot.slane %v2098, 4
    %v2100 = vadd.f32 %v2098, %v2099
    %v2101 = vrot.slane %v2100, 2
    %v2102 = vadd.f32 %v2100, %v2101
    %v2103 = vrot.slane %v2102, 1
    %v2104 = vadd.f32 %v2102, %v2103
    %s2105 = vtos %v2104
    %s2106 = smax.f32 %s2105, 1e-06
    %v2107 = vstv %s2106
    %v2108 = vrcp.pop %v2107
    %v2109 = vmul.f32 %v1906, %v2108
    %v2110 = vmul.f32 %v1908, %v2108
    %v2111 = vmul.f32 %v1910, %v2108
    %v2112 = vmul.f32 %v1912, %v2108
    %v2113 = vmul.f32 %v1914, %v2108
    %v2114 = vmul.f32 %v1916, %v2108
    %v2115 = vmul.f32 %v1918, %v2108
    %v2116 = vmul.f32 %v1920, %v2108
    %v2117 = vmul.f32 %v1922, %v2108
    %v2118 = vmul.f32 %v1924, %v2108
    %v2119 = vmul.f32 %v1926, %v2108
    %v2120 = vmul.f32 %v1928, %v2108
    %v2121 = vmul.f32 %v1930, %v2108
    %v2122 = vmul.f32 %v1932, %v2108
    %v2123 = vmul.f32 %v1934, %v2108
    %v2124 = vmul.f32 %v1936, %v2108
    %v2125 = vmul.f32 %v1938, %v2108
    %v2126 = vmul.f32 %v1940, %v2108
    %v2127 = vmul.f32 %v1942, %v2108
    %v2128 = vmul.f32 %v1944, %v2108
    %v2129 = vmul.f32 %v1946, %v2108
    %v2130 = vmul.f32 %v1948, %v2108
    %v2131 = vmul.f32 %v1950, %v2108
    %v2132 = vmul.f32 %v1952, %v2108
    %v2133 = vmul.f32 %v1954, %v2108
    %v2134 = vmul.f32 %v1956, %v2108
    %v2135 = vmul.f32 %v1958, %v2108
    %v2136 = vmul.f32 %v1960, %v2108
    %v2137 = vmul.f32 %v1962, %v2108
    %v2138 = vmul.f32 %v1964, %v2108
    %v2139 = vmul.f32 %v1966, %v2108
    %v2140 = vmul.f32 %v1968, %v2108
    %v2141 = vmul.f32 %v366, %v2109
    %v2142 = vmul.f32 %v371, %v2110
    %v2143 = vmul.f32 %v376, %v2111
    %v2144 = vmul.f32 %v381, %v2112
    %v2145 = vmul.f32 %v386, %v2113
    %v2146 = vmul.f32 %v391, %v2114
    %v2147 = vmul.f32 %v396, %v2115
    %v2148 = vmul.f32 %v401, %v2116
    %v2149 = vmul.f32 %v406, %v2117
    %v2150 = vmul.f32 %v411, %v2118
    %v2151 = vmul.f32 %v416, %v2119
    %v2152 = vmul.f32 %v421, %v2120
    %v2153 = vmul.f32 %v426, %v2121
    %v2154 = vmul.f32 %v431, %v2122
    %v2155 = vmul.f32 %v436, %v2123
    %v2156 = vmul.f32 %v441, %v2124
    %v2157 = vmul.f32 %v446, %v2125
    %v2158 = vmul.f32 %v451, %v2126
    %v2159 = vmul.f32 %v456, %v2127
    %v2160 = vmul.f32 %v461, %v2128
    %v2161 = vmul.f32 %v466, %v2129
    %v2162 = vmul.f32 %v471, %v2130
    %v2163 = vmul.f32 %v476, %v2131
    %v2164 = vmul.f32 %v481, %v2132
    %v2165 = vmul.f32 %v486, %v2133
    %v2166 = vmul.f32 %v491, %v2134
    %v2167 = vmul.f32 %v496, %v2135
    %v2168 = vmul.f32 %v501, %v2136
    %v2169 = vmul.f32 %v506, %v2137
    %v2170 = vmul.f32 %v511, %v2138
    %v2171 = vmul.f32 %v516, %v2139
    %v2172 = vmul.f32 %v521, %v2140
    %v2173 = vsel %vm684, %v2141, 0.0
    %v2174 = vsel %vm684, %v2142, 0.0
    %v2175 = vadd.f32 %v2173, %v2174
    %v2176 = vsel %vm684, %v2143, 0.0
    %v2177 = vadd.f32 %v2175, %v2176
    %v2178 = vsel %vm684, %v2144, 0.0
    %v2179 = vadd.f32 %v2177, %v2178
    %v2180 = vsel %vm684, %v2145, 0.0
    %v2181 = vadd.f32 %v2179, %v2180
    %v2182 = vsel %vm684, %v2146, 0.0
    %v2183 = vadd.f32 %v2181, %v2182
    %v2184 = vsel %vm684, %v2147, 0.0
    %v2185 = vadd.f32 %v2183, %v2184
    %v2186 = vsel %vm684, %v2148, 0.0
    %v2187 = vadd.f32 %v2185, %v2186
    %v2188 = vsel %vm684, %v2149, 0.0
    %v2189 = vadd.f32 %v2187, %v2188
    %v2190 = vsel %vm684, %v2150, 0.0
    %v2191 = vadd.f32 %v2189, %v2190
    %v2192 = vsel %vm684, %v2151, 0.0
    %v2193 = vadd.f32 %v2191, %v2192
    %v2194 = vsel %vm684, %v2152, 0.0
    %v2195 = vadd.f32 %v2193, %v2194
    %v2196 = vsel %vm684, %v2153, 0.0
    %v2197 = vadd.f32 %v2195, %v2196
    %v2198 = vsel %vm684, %v2154, 0.0
    %v2199 = vadd.f32 %v2197, %v2198
    %v2200 = vsel %vm684, %v2155, 0.0
    %v2201 = vadd.f32 %v2199, %v2200
    %v2202 = vsel %vm684, %v2156, 0.0
    %v2203 = vadd.f32 %v2201, %v2202
    %v2204 = vsel %vm684, %v2157, 0.0
    %v2205 = vadd.f32 %v2203, %v2204
    %v2206 = vsel %vm684, %v2158, 0.0
    %v2207 = vadd.f32 %v2205, %v2206
    %v2208 = vsel %vm684, %v2159, 0.0
    %v2209 = vadd.f32 %v2207, %v2208
    %v2210 = vsel %vm684, %v2160, 0.0
    %v2211 = vadd.f32 %v2209, %v2210
    %v2212 = vsel %vm684, %v2161, 0.0
    %v2213 = vadd.f32 %v2211, %v2212
    %v2214 = vsel %vm684, %v2162, 0.0
    %v2215 = vadd.f32 %v2213, %v2214
    %v2216 = vsel %vm684, %v2163, 0.0
    %v2217 = vadd.f32 %v2215, %v2216
    %v2218 = vsel %vm684, %v2164, 0.0
    %v2219 = vadd.f32 %v2217, %v2218
    %v2220 = vsel %vm684, %v2165, 0.0
    %v2221 = vadd.f32 %v2219, %v2220
    %v2222 = vsel %vm684, %v2166, 0.0
    %v2223 = vadd.f32 %v2221, %v2222
    %v2224 = vsel %vm684, %v2167, 0.0
    %v2225 = vadd.f32 %v2223, %v2224
    %v2226 = vsel %vm684, %v2168, 0.0
    %v2227 = vadd.f32 %v2225, %v2226
    %v2228 = vsel %vm684, %v2169, 0.0
    %v2229 = vadd.f32 %v2227, %v2228
    %v2230 = vsel %vm684, %v2170, 0.0
    %v2231 = vadd.f32 %v2229, %v2230
    %v2232 = vsel %vm684, %v2171, 0.0
    %v2233 = vadd.f32 %v2231, %v2232
    %v2234 = vsel %vm684, %v2172, 0.0
    %v2235 = vadd.f32 %v2233, %v2234
    %v2236 = vrot.slane %v2235, 4
    %v2237 = vadd.f32 %v2235, %v2236
    %v2238 = vrot.slane %v2237, 2
    %v2239 = vadd.f32 %v2237, %v2238
    %v2240 = vrot.slane %v2239, 1
    %v2241 = vadd.f32 %v2239, %v2240
    %v2242 = vld [vmem:[%s3] sm:$0x1f]
    %v2243 = vld [vmem:[%s3 + $0x8] sm:$0x1f]
    %2244 = vmatprep.subr.mxu0 0.0
    %2245 = vmatpush1.msra.mxu0 %v1262
    %2246 = vmatprep.subr.mxu0 0.0
    %2247 = vmatpush1.msra.mxu0 %v1264
    %2248 = vmatprep.subr.mxu0 0.0
    %2249 = vmatpush1.msra.mxu0 %v1266
    %2250 = vmatprep.subr.mxu0 0.0
    %2251 = vmatpush1.msra.mxu0 %v1268
    %2252 = vmatprep.subr.mxu0 0.0
    %2253 = vmatpush1.msra.mxu0 %v1270
    %2254 = vmatprep.subr.mxu0 0.0
    %2255 = vmatpush1.msra.mxu0 %v1272
    %2256 = vmatprep.subr.mxu0 0.0
    %2257 = vmatpush1.msra.mxu0 %v1274
    %2258 = vmatprep.subr.mxu0 0.0
    %2259 = vmatpush1.msra.mxu0 %v1276
    %2260 = vmatprep.subr.mxu0 0.0
    %2261 = vmatpush1.msra.mxu0 %v1278
    %2262 = vmatprep.subr.mxu0 0.0
    %2263 = vmatpush1.msra.mxu0 %v1280
    %2264 = vmatprep.subr.mxu0 0.0
    %2265 = vmatpush1.msra.mxu0 %v1282
    %2266 = vmatprep.subr.mxu0 0.0
    %2267 = vmatpush1.msra.mxu0 %v1284
    %2268 = vmatprep.subr.mxu0 0.0
    %2269 = vmatpush1.msra.mxu0 %v1286
    %2270 = vmatprep.subr.mxu0 0.0
    %2271 = vmatpush1.msra.mxu0 %v1288
    %2272 = vmatprep.subr.mxu0 0.0
    %2273 = vmatpush1.msra.mxu0 %v1290
    %2274 = vmatprep.subr.mxu0 0.0
    %2275 = vmatpush1.msra.mxu0 %v1292
    %2276 = vmatprep.subr.mxu0 0.0
    %2277 = vmatpush1.msra.mxu0 %v1294
    %2278 = vmatprep.subr.mxu0 0.0
    %2279 = vmatpush1.msra.mxu0 %v1296
    %2280 = vmatprep.subr.mxu0 0.0
    %2281 = vmatpush1.msra.mxu0 %v1298
    %2282 = vmatprep.subr.mxu0 0.0
    %2283 = vmatpush1.msra.mxu0 %v1300
    %2284 = vmatprep.subr.mxu0 0.0
    %2285 = vmatpush1.msra.mxu0 %v1302
    %2286 = vmatprep.subr.mxu0 0.0
    %2287 = vmatpush1.msra.mxu0 %v1304
    %2288 = vmatprep.subr.mxu0 0.0
    %2289 = vmatpush1.msra.mxu0 %v1306
    %2290 = vmatprep.subr.mxu0 0.0
    %2291 = vmatpush1.msra.mxu0 %v1308
    %2292 = vmatprep.subr.mxu0 0.0
    %2293 = vmatpush1.msra.mxu0 %v1310
    %2294 = vmatprep.subr.mxu0 0.0
    %2295 = vmatpush1.msra.mxu0 %v1312
    %2296 = vmatprep.subr.mxu0 0.0
    %2297 = vmatpush1.msra.mxu0 %v1314
    %2298 = vmatprep.subr.mxu0 0.0
    %2299 = vmatpush1.msra.mxu0 %v1316
    %2300 = vmatprep.subr.mxu0 0.0
    %2301 = vmatpush1.msra.mxu0 %v1318
    %2302 = vmatprep.subr.mxu0 0.0
    %2303 = vmatpush1.msra.mxu0 %v1320
    %2304 = vmatprep.subr.mxu0 0.0
    %2305 = vmatpush1.msra.mxu0 %v1322
    %2306 = vmatprep.subr.mxu0 0.0
    %2307 = vmatpush1.msra.mxu0 %v1324
    %2308 = vmatprep.mubr.f32.mxu0 %v2243
    %2309 = vmatmul.mubr.f32.gmra.mrb[0].mxu0 %v2242
    %v2310 = vpop.f32.mrb[0].mxu0
    %v2311 = vadd.f32 0.0, %v2310
    %v2312 = vpop.f32.mrb[0].mxu0
    %2313 = vdwg.mxu0
    %v2314 = vadd.f32 %v2311, 1e-06
    %v2315 = vmul.f32 %v2311, 7.5
    %v2317 = vrot.slane %v2315, 7
    %v2319 = vadd.f32 %v2311, %v2317
    %v2320 = vadd.f32 %v2319, 0.00012
    %v2322 = vrot.slane %v2314, 7
    %v2324 = vrcp.pop %v2322
    %v2325 = vmul.f32 %v2320, %v2324
    %v2326 = vrot.slane %v2315, 6
    %v2328 = vadd.f32 %v2311, %v2326
    %v2329 = vadd.f32 %v2328, 0.00012
    %v2330 = vrot.slane %v2314, 6
    %v2332 = vrcp.pop %v2330
    %v2333 = vmul.f32 %v2329, %v2332
    %v2334 = vsub.f32 %v2325, 7.5
    %v2335 = vsub.f32 %v2333, 7.5
    %v2336 = vadd.f32 %v2311, 0.00034
    %v2337 = vmul.f32 %v2334, 2.0
    %v2338 = vmul.f32 %v2337, %v2311
    %v2340 = vrot.slane %v2338, 6
    %v2342 = vsub.f32 %v2336, %v2340
    %v2343 = vmul.f32 %v2334, %v2334
    %v2344 = vadd.f32 %v2311, 1.6e-05
    %v2346 = vrot.slane %v2344, 7
    %v2348 = vmul.f32 %v2343, %v2346
    %v2350 = vrot.slane %v2348, 6
    %v2352 = vadd.f32 %v2342, %v2350
    %v2353 = vmul.f32 %v2335, 2.0
    %v2354 = vmul.f32 %v2353, %v2311
    %v2356 = vrot.slane %v2354, 6
    %v2358 = vsub.f32 %v2336, %v2356
    %v2359 = vmul.f32 %v2335, %v2335
    %v2360 = vrot.slane %v2344, 6
    %v2362 = vmul.f32 %v2359, %v2360
    %v2364 = vrot.slane %v2362, 6
    %v2366 = vadd.f32 %v2358, %v2364
    %v2367 = vmax.f32 %v2352, 0.0
    %v2368 = vrot.slane %v2314, 5
    %v2370 = vrcp.pop %v2368
    %v2371 = vmul.f32 %v2367, %v2370
    %v2372 = vrsqrt.pop %v2371
    %v2373 = vmul.f32 %v2371, %v2372
    %vm2374 = vcmp.eq.f32.partialorder %v2371, inf
    %v2375 = vsel %vm2374, %v2371, %v2373
    %vm2376 = vcmp.eq.f32.partialorder %v2371, 0.0
    %v2377 = vand.u32 %v2371, 2147483648
    %v2378 = vsel %vm2376, %v2377, %v2375
    %v2379 = vmax.f32 %v2366, 0.0
    %v2380 = vrot.slane %v2314, 4
    %v2382 = vrcp.pop %v2380
    %v2383 = vmul.f32 %v2379, %v2382
    %v2384 = vrsqrt.pop %v2383
    %v2385 = vmul.f32 %v2383, %v2384
    %vm2386 = vcmp.eq.f32.partialorder %v2383, inf
    %v2387 = vsel %vm2386, %v2383, %v2385
    %vm2388 = vcmp.eq.f32.partialorder %v2383, 0.0
    %v2389 = vand.u32 %v2383, 2147483648
    %v2390 = vsel %vm2388, %v2389, %v2387
    %v2392 = vrot.slane %v2325, 1
    %2393 = vrot.lane.b32.xlu0 %v2392, 5
    %v2394 = vpop.permute.xlu0 %2393
    %v2397 = vrot.slane %v2333, 2
    %2398 = vrot.lane.b32.xlu0 %v2397, 10
    %v2399 = vpop.permute.xlu0 %2398
    %v2402 = vrot.slane %v2378, 3
    %2403 = vrot.lane.b32.xlu0 %v2402, 15
    %v2404 = vpop.permute.xlu0 %2403
    %v2407 = vrot.slane %v2390, 4
    %2408 = vrot.lane.b32.xlu0 %v2407, 20
    %v2409 = vpop.permute.xlu0 %2408
    %v2411 = vsel %vm684, %v2241, %v2394
    %vm2412 = vcmask 80896
    %v2413 = vsel %vm2412, %v2411, %v2399
    %vm2414 = vcmask 121856
    %v2415 = vsel %vm2414, %v2413, %v2404
    %vm2416 = vcmask 162816
    %v2417 = vsel %vm2416, %v2415, %v2409
    %v2418 = vsel %vm2033, %v1970, 0.0
    %v2419 = vsel %vm2033, %v1972, 0.0
    %v2420 = vadd.f32 %v2418, %v2419
    %v2421 = vsel %vm2033, %v1974, 0.0
    %v2422 = vadd.f32 %v2420, %v2421
    %v2423 = vsel %vm2033, %v1976, 0.0
    %v2424 = vadd.f32 %v2422, %v2423
    %v2425 = vsel %vm2033, %v1978, 0.0
    %v2426 = vadd.f32 %v2424, %v2425
    %v2427 = vsel %vm2033, %v1980, 0.0
    %v2428 = vadd.f32 %v2426, %v2427
    %v2429 = vsel %vm2033, %v1982, 0.0
    %v2430 = vadd.f32 %v2428, %v2429
    %v2431 = vsel %vm2033, %v1984, 0.0
    %v2432 = vadd.f32 %v2430, %v2431
    %v2433 = vsel %vm2033, %v1986, 0.0
    %v2434 = vadd.f32 %v2432, %v2433
    %v2435 = vsel %vm2033, %v1988, 0.0
    %v2436 = vadd.f32 %v2434, %v2435
    %v2437 = vsel %vm2033, %v1990, 0.0
    %v2438 = vadd.f32 %v2436, %v2437
    %v2439 = vsel %vm2033, %v1992, 0.0
    %v2440 = vadd.f32 %v2438, %v2439
    %v2441 = vsel %vm2033, %v1994, 0.0
    %v2442 = vadd.f32 %v2440, %v2441
    %v2443 = vsel %vm2033, %v1996, 0.0
    %v2444 = vadd.f32 %v2442, %v2443
    %v2445 = vsel %vm2033, %v1998, 0.0
    %v2446 = vadd.f32 %v2444, %v2445
    %v2447 = vsel %vm2033, %v2000, 0.0
    %v2448 = vadd.f32 %v2446, %v2447
    %v2449 = vsel %vm2033, %v2002, 0.0
    %v2450 = vadd.f32 %v2448, %v2449
    %v2451 = vsel %vm2033, %v2004, 0.0
    %v2452 = vadd.f32 %v2450, %v2451
    %v2453 = vsel %vm2033, %v2006, 0.0
    %v2454 = vadd.f32 %v2452, %v2453
    %v2455 = vsel %vm2033, %v2008, 0.0
    %v2456 = vadd.f32 %v2454, %v2455
    %v2457 = vsel %vm2033, %v2010, 0.0
    %v2458 = vadd.f32 %v2456, %v2457
    %v2459 = vsel %vm2033, %v2012, 0.0
    %v2460 = vadd.f32 %v2458, %v2459
    %v2461 = vsel %vm2033, %v2014, 0.0
    %v2462 = vadd.f32 %v2460, %v2461
    %v2463 = vsel %vm2033, %v2016, 0.0
    %v2464 = vadd.f32 %v2462, %v2463
    %v2465 = vsel %vm2033, %v2018, 0.0
    %v2466 = vadd.f32 %v2464, %v2465
    %v2467 = vsel %vm2033, %v2020, 0.0
    %v2468 = vadd.f32 %v2466, %v2467
    %v2469 = vsel %vm2033, %v2022, 0.0
    %v2470 = vadd.f32 %v2468, %v2469
    %v2471 = vsel %vm2033, %v2024, 0.0
    %v2472 = vadd.f32 %v2470, %v2471
    %v2473 = vsel %vm2033, %v2026, 0.0
    %v2474 = vadd.f32 %v2472, %v2473
    %v2475 = vsel %vm2033, %v2028, 0.0
    %v2476 = vadd.f32 %v2474, %v2475
    %v2477 = vsel %vm2033, %v2030, 0.0
    %v2478 = vadd.f32 %v2476, %v2477
    %v2479 = vsel %vm2033, %v2032, 0.0
    %v2480 = vadd.f32 %v2478, %v2479
    %2481 = vadd.xlane.f32.xlu0 %v2480
    %v2482 = vpop.xlane.xlu0 %2481
    %v2483 = vrot.slane %v2482, 4
    %v2484 = vadd.f32 %v2482, %v2483
    %v2485 = vrot.slane %v2484, 2
    %v2486 = vadd.f32 %v2484, %v2485
    %v2487 = vrot.slane %v2486, 1
    %v2488 = vadd.f32 %v2486, %v2487
    %s2489 = vtos %v2488
    %s2490 = smax.f32 %s2489, 1e-06
    %v2491 = vstv %s2490
    %v2492 = vrcp.pop %v2491
    %v2493 = vmul.f32 %v1970, %v2492
    %v2494 = vmul.f32 %v1972, %v2492
    %v2495 = vmul.f32 %v1974, %v2492
    %v2496 = vmul.f32 %v1976, %v2492
    %v2497 = vmul.f32 %v1978, %v2492
    %v2498 = vmul.f32 %v1980, %v2492
    %v2499 = vmul.f32 %v1982, %v2492
    %v2500 = vmul.f32 %v1984, %v2492
    %v2501 = vmul.f32 %v1986, %v2492
    %v2502 = vmul.f32 %v1988, %v2492
    %v2503 = vmul.f32 %v1990, %v2492
    %v2504 = vmul.f32 %v1992, %v2492
    %v2505 = vmul.f32 %v1994, %v2492
    %v2506 = vmul.f32 %v1996, %v2492
    %v2507 = vmul.f32 %v1998, %v2492
    %v2508 = vmul.f32 %v2000, %v2492
    %v2509 = vmul.f32 %v2002, %v2492
    %v2510 = vmul.f32 %v2004, %v2492
    %v2511 = vmul.f32 %v2006, %v2492
    %v2512 = vmul.f32 %v2008, %v2492
    %v2513 = vmul.f32 %v2010, %v2492
    %v2514 = vmul.f32 %v2012, %v2492
    %v2515 = vmul.f32 %v2014, %v2492
    %v2516 = vmul.f32 %v2016, %v2492
    %v2517 = vmul.f32 %v2018, %v2492
    %v2518 = vmul.f32 %v2020, %v2492
    %v2519 = vmul.f32 %v2022, %v2492
    %v2520 = vmul.f32 %v2024, %v2492
    %v2521 = vmul.f32 %v2026, %v2492
    %v2522 = vmul.f32 %v2028, %v2492
    %v2523 = vmul.f32 %v2030, %v2492
    %v2524 = vmul.f32 %v2032, %v2492
    %v2525 = vmul.f32 %v526, %v2493
    %v2526 = vmul.f32 %v531, %v2494
    %v2527 = vmul.f32 %v536, %v2495
    %v2528 = vmul.f32 %v541, %v2496
    %v2529 = vmul.f32 %v546, %v2497
    %v2530 = vmul.f32 %v551, %v2498
    %v2531 = vmul.f32 %v556, %v2499
    %v2532 = vmul.f32 %v561, %v2500
    %v2533 = vmul.f32 %v566, %v2501
    %v2534 = vmul.f32 %v571, %v2502
    %v2535 = vmul.f32 %v576, %v2503
    %v2536 = vmul.f32 %v581, %v2504
    %v2537 = vmul.f32 %v586, %v2505
    %v2538 = vmul.f32 %v591, %v2506
    %v2539 = vmul.f32 %v596, %v2507
    %v2540 = vmul.f32 %v601, %v2508
    %v2541 = vmul.f32 %v606, %v2509
    %v2542 = vmul.f32 %v611, %v2510
    %v2543 = vmul.f32 %v616, %v2511
    %v2544 = vmul.f32 %v621, %v2512
    %v2545 = vmul.f32 %v626, %v2513
    %v2546 = vmul.f32 %v631, %v2514
    %v2547 = vmul.f32 %v636, %v2515
    %v2548 = vmul.f32 %v641, %v2516
    %v2549 = vmul.f32 %v646, %v2517
    %v2550 = vmul.f32 %v651, %v2518
    %v2551 = vmul.f32 %v656, %v2519
    %v2552 = vmul.f32 %v661, %v2520
    %v2553 = vmul.f32 %v666, %v2521
    %v2554 = vmul.f32 %v671, %v2522
    %v2555 = vmul.f32 %v676, %v2523
    %v2556 = vmul.f32 %v681, %v2524
    %v2557 = vsel %vm684, %v2525, 0.0
    %v2558 = vsel %vm684, %v2526, 0.0
    %v2559 = vadd.f32 %v2557, %v2558
    %v2560 = vsel %vm684, %v2527, 0.0
    %v2561 = vadd.f32 %v2559, %v2560
    %v2562 = vsel %vm684, %v2528, 0.0
    %v2563 = vadd.f32 %v2561, %v2562
    %v2564 = vsel %vm684, %v2529, 0.0
    %v2565 = vadd.f32 %v2563, %v2564
    %v2566 = vsel %vm684, %v2530, 0.0
    %v2567 = vadd.f32 %v2565, %v2566
    %v2568 = vsel %vm684, %v2531, 0.0
    %v2569 = vadd.f32 %v2567, %v2568
    %v2570 = vsel %vm684, %v2532, 0.0
    %v2571 = vadd.f32 %v2569, %v2570
    %v2572 = vsel %vm684, %v2533, 0.0
    %v2573 = vadd.f32 %v2571, %v2572
    %v2574 = vsel %vm684, %v2534, 0.0
    %v2575 = vadd.f32 %v2573, %v2574
    %v2576 = vsel %vm684, %v2535, 0.0
    %v2577 = vadd.f32 %v2575, %v2576
    %v2578 = vsel %vm684, %v2536, 0.0
    %v2579 = vadd.f32 %v2577, %v2578
    %v2580 = vsel %vm684, %v2537, 0.0
    %v2581 = vadd.f32 %v2579, %v2580
    %v2582 = vsel %vm684, %v2538, 0.0
    %v2583 = vadd.f32 %v2581, %v2582
    %v2584 = vsel %vm684, %v2539, 0.0
    %v2585 = vadd.f32 %v2583, %v2584
    %v2586 = vsel %vm684, %v2540, 0.0
    %v2587 = vadd.f32 %v2585, %v2586
    %v2588 = vsel %vm684, %v2541, 0.0
    %v2589 = vadd.f32 %v2587, %v2588
    %v2590 = vsel %vm684, %v2542, 0.0
    %v2591 = vadd.f32 %v2589, %v2590
    %v2592 = vsel %vm684, %v2543, 0.0
    %v2593 = vadd.f32 %v2591, %v2592
    %v2594 = vsel %vm684, %v2544, 0.0
    %v2595 = vadd.f32 %v2593, %v2594
    %v2596 = vsel %vm684, %v2545, 0.0
    %v2597 = vadd.f32 %v2595, %v2596
    %v2598 = vsel %vm684, %v2546, 0.0
    %v2599 = vadd.f32 %v2597, %v2598
    %v2600 = vsel %vm684, %v2547, 0.0
    %v2601 = vadd.f32 %v2599, %v2600
    %v2602 = vsel %vm684, %v2548, 0.0
    %v2603 = vadd.f32 %v2601, %v2602
    %v2604 = vsel %vm684, %v2549, 0.0
    %v2605 = vadd.f32 %v2603, %v2604
    %v2606 = vsel %vm684, %v2550, 0.0
    %v2607 = vadd.f32 %v2605, %v2606
    %v2608 = vsel %vm684, %v2551, 0.0
    %v2609 = vadd.f32 %v2607, %v2608
    %v2610 = vsel %vm684, %v2552, 0.0
    %v2611 = vadd.f32 %v2609, %v2610
    %v2612 = vsel %vm684, %v2553, 0.0
    %v2613 = vadd.f32 %v2611, %v2612
    %v2614 = vsel %vm684, %v2554, 0.0
    %v2615 = vadd.f32 %v2613, %v2614
    %v2616 = vsel %vm684, %v2555, 0.0
    %v2617 = vadd.f32 %v2615, %v2616
    %v2618 = vsel %vm684, %v2556, 0.0
    %v2619 = vadd.f32 %v2617, %v2618
    %v2620 = vrot.slane %v2619, 4
    %v2621 = vadd.f32 %v2619, %v2620
    %v2622 = vrot.slane %v2621, 2
    %v2623 = vadd.f32 %v2621, %v2622
    %v2624 = vrot.slane %v2623, 1
    %v2625 = vadd.f32 %v2623, %v2624
    %2626 = vmatprep.subr.mxu0 0.0
    %2627 = vmatpush1.msra.mxu0 %v1326
    %2628 = vmatprep.subr.mxu0 0.0
    %2629 = vmatpush1.msra.mxu0 %v1328
    %2630 = vmatprep.subr.mxu0 0.0
    %2631 = vmatpush1.msra.mxu0 %v1330
    %2632 = vmatprep.subr.mxu0 0.0
    %2633 = vmatpush1.msra.mxu0 %v1332
    %2634 = vmatprep.subr.mxu0 0.0
    %2635 = vmatpush1.msra.mxu0 %v1334
    %2636 = vmatprep.subr.mxu0 0.0
    %2637 = vmatpush1.msra.mxu0 %v1336
    %2638 = vmatprep.subr.mxu0 0.0
    %2639 = vmatpush1.msra.mxu0 %v1338
    %2640 = vmatprep.subr.mxu0 0.0
    %2641 = vmatpush1.msra.mxu0 %v1340
    %2642 = vmatprep.subr.mxu0 0.0
    %2643 = vmatpush1.msra.mxu0 %v1342
    %2644 = vmatprep.subr.mxu0 0.0
    %2645 = vmatpush1.msra.mxu0 %v1344
    %2646 = vmatprep.subr.mxu0 0.0
    %2647 = vmatpush1.msra.mxu0 %v1346
    %2648 = vmatprep.subr.mxu0 0.0
    %2649 = vmatpush1.msra.mxu0 %v1348
    %2650 = vmatprep.subr.mxu0 0.0
    %2651 = vmatpush1.msra.mxu0 %v1350
    %2652 = vmatprep.subr.mxu0 0.0
    %2653 = vmatpush1.msra.mxu0 %v1352
    %2654 = vmatprep.subr.mxu0 0.0
    %2655 = vmatpush1.msra.mxu0 %v1354
    %2656 = vmatprep.subr.mxu0 0.0
    %2657 = vmatpush1.msra.mxu0 %v1356
    %2658 = vmatprep.subr.mxu0 0.0
    %2659 = vmatpush1.msra.mxu0 %v1358
    %2660 = vmatprep.subr.mxu0 0.0
    %2661 = vmatpush1.msra.mxu0 %v1360
    %2662 = vmatprep.subr.mxu0 0.0
    %2663 = vmatpush1.msra.mxu0 %v1362
    %2664 = vmatprep.subr.mxu0 0.0
    %2665 = vmatpush1.msra.mxu0 %v1364
    %2666 = vmatprep.subr.mxu0 0.0
    %2667 = vmatpush1.msra.mxu0 %v1366
    %2668 = vmatprep.subr.mxu0 0.0
    %2669 = vmatpush1.msra.mxu0 %v1368
    %2670 = vmatprep.subr.mxu0 0.0
    %2671 = vmatpush1.msra.mxu0 %v1370
    %2672 = vmatprep.subr.mxu0 0.0
    %2673 = vmatpush1.msra.mxu0 %v1372
    %2674 = vmatprep.subr.mxu0 0.0
    %2675 = vmatpush1.msra.mxu0 %v1374
    %2676 = vmatprep.subr.mxu0 0.0
    %2677 = vmatpush1.msra.mxu0 %v1376
    %2678 = vmatprep.subr.mxu0 0.0
    %2679 = vmatpush1.msra.mxu0 %v1378
    %2680 = vmatprep.subr.mxu0 0.0
    %2681 = vmatpush1.msra.mxu0 %v1380
    %2682 = vmatprep.subr.mxu0 0.0
    %2683 = vmatpush1.msra.mxu0 %v1382
    %2684 = vmatprep.subr.mxu0 0.0
    %2685 = vmatpush1.msra.mxu0 %v1384
    %2686 = vmatprep.subr.mxu0 0.0
    %2687 = vmatpush1.msra.mxu0 %v1386
    %2688 = vmatprep.subr.mxu0 0.0
    %2689 = vmatpush1.msra.mxu0 %v1388
    %2690 = vmatprep.mubr.f32.mxu0 %v2243
    %2691 = vmatmul.mubr.f32.gmra.mrb[0].mxu0 %v2242
    %v2692 = vpop.f32.mrb[0].mxu0
    %v2693 = vadd.f32 0.0, %v2692
    %v2694 = vpop.f32.mrb[0].mxu0
    %2695 = vdwg.mxu0
    %v2696 = vadd.f32 %v2693, 1e-06
    %v2697 = vmul.f32 %v2693, 7.5
    %v2699 = vrot.slane %v2697, 7
    %v2701 = vadd.f32 %v2693, %v2699
    %v2702 = vadd.f32 %v2701, 0.00012
    %v2704 = vrot.slane %v2696, 7
    %v2706 = vrcp.pop %v2704
    %v2707 = vmul.f32 %v2702, %v2706
    %v2708 = vrot.slane %v2697, 6
    %v2710 = vadd.f32 %v2693, %v2708
    %v2711 = vadd.f32 %v2710, 0.00012
    %v2712 = vrot.slane %v2696, 6
    %v2714 = vrcp.pop %v2712
    %v2715 = vmul.f32 %v2711, %v2714
    %v2716 = vsub.f32 %v2707, 7.5
    %v2717 = vsub.f32 %v2715, 7.5
    %v2718 = vadd.f32 %v2693, 0.00034
    %v2719 = vmul.f32 %v2716, 2.0
    %v2720 = vmul.f32 %v2719, %v2693
    %v2722 = vrot.slane %v2720, 6
    %v2724 = vsub.f32 %v2718, %v2722
    %v2725 = vmul.f32 %v2716, %v2716
    %v2726 = vadd.f32 %v2693, 1.6e-05
    %v2728 = vrot.slane %v2726, 7
    %v2730 = vmul.f32 %v2725, %v2728
    %v2732 = vrot.slane %v2730, 6
    %v2734 = vadd.f32 %v2724, %v2732
    %v2735 = vmul.f32 %v2717, 2.0
    %v2736 = vmul.f32 %v2735, %v2693
    %v2738 = vrot.slane %v2736, 6
    %v2740 = vsub.f32 %v2718, %v2738
    %v2741 = vmul.f32 %v2717, %v2717
    %v2742 = vrot.slane %v2726, 6
    %v2744 = vmul.f32 %v2741, %v2742
    %v2746 = vrot.slane %v2744, 6
    %v2748 = vadd.f32 %v2740, %v2746
    %v2749 = vmax.f32 %v2734, 0.0
    %v2750 = vrot.slane %v2696, 5
    %v2752 = vrcp.pop %v2750
    %v2753 = vmul.f32 %v2749, %v2752
    %v2754 = vrsqrt.pop %v2753
    %v2755 = vmul.f32 %v2753, %v2754
    %vm2756 = vcmp.eq.f32.partialorder %v2753, inf
    %v2757 = vsel %vm2756, %v2753, %v2755
    %vm2758 = vcmp.eq.f32.partialorder %v2753, 0.0
    %v2759 = vand.u32 %v2753, 2147483648
    %v2760 = vsel %vm2758, %v2759, %v2757
    %v2761 = vmax.f32 %v2748, 0.0
    %v2762 = vrot.slane %v2696, 4
    %v2764 = vrcp.pop %v2762
    %v2765 = vmul.f32 %v2761, %v2764
    %v2766 = vrsqrt.pop %v2765
    %v2767 = vmul.f32 %v2765, %v2766
    %vm2768 = vcmp.eq.f32.partialorder %v2765, inf
    %v2769 = vsel %vm2768, %v2765, %v2767
    %vm2770 = vcmp.eq.f32.partialorder %v2765, 0.0
    %v2771 = vand.u32 %v2765, 2147483648
    %v2772 = vsel %vm2770, %v2771, %v2769
    %v2774 = vrot.slane %v2707, 1
    %2775 = vrot.lane.b32.xlu0 %v2774, 5
    %v2776 = vpop.permute.xlu0 %2775
    %v2779 = vrot.slane %v2715, 2
    %2780 = vrot.lane.b32.xlu0 %v2779, 10
    %v2781 = vpop.permute.xlu0 %2780
    %v2784 = vrot.slane %v2760, 3
    %2785 = vrot.lane.b32.xlu0 %v2784, 15
    %v2786 = vpop.permute.xlu0 %2785
    %v2789 = vrot.slane %v2772, 4
    %2790 = vrot.lane.b32.xlu0 %v2789, 20
    %v2791 = vpop.permute.xlu0 %2790
    %v2793 = vsel %vm684, %v2625, %v2776
    %v2794 = vsel %vm2412, %v2793, %v2781
    %v2795 = vsel %vm2414, %v2794, %v2786
    %v2796 = vsel %vm2416, %v2795, %v2791
    %v2798 = vrot.slane %v2796, 7
    %vm2800 = vcmask 1040384
    %v2801 = vsel %vm2800, %v2417, %v2798
    %v2802 = vld [vmem:[%s4] sm:$0xff]
    %v2803 = vld [vmem:[%s4 + $0x8] sm:$0xff]
    %v2804 = vld [vmem:[%s4 + $0x10] sm:$0xff]
    %v2805 = vld [vmem:[%s4 + $0x18] sm:$0x1]
    %v2806 = vld [vmem:[%s5] sm:$0x1]
    %v2808 = vlaneseq
    %v2809 = vshrl.u32 %v2808, 7
    %v2810 = vsub.s32 0, %v2809
    %v2811 = vrot.slane %v2806, %v2810
    %vm2813 = vcmask 203776
    %v2815 = vsel %vm2813, %v2801, 0
    %v2818 = vsel %vm2800, %v2805, 0
    %2820 = vmatprep.subr.mxu0 0.0
    %2821 = vmatpush1.msra.mxu0 %v2802
    %2822 = vmatprep.subr.mxu0 0.0
    %2823 = vmatpush1.msra.mxu0 %v2803
    %2824 = vmatprep.subr.mxu0 0.0
    %2825 = vmatpush1.msra.mxu0 %v2804
    %2826 = vmatprep.subr.mxu0 0.0
    %2827 = vmatpush1.msra.mxu0 %v2818
    %2828 = vmatprep.subr.mxu0 0.0
    %2829 = vmatpush1.msra.mxu0 0.0
    %2830 = vmatprep.subr.mxu0 0.0
    %2831 = vmatpush1.msra.mxu0 0.0
    %2832 = vmatprep.subr.mxu0 0.0
    %2833 = vmatpush1.msra.mxu0 0.0
    %2834 = vmatprep.subr.mxu0 0.0
    %2835 = vmatpush1.msra.mxu0 0.0
    %2836 = vmatprep.subr.mxu0 0.0
    %2837 = vmatpush1.msra.mxu0 0.0
    %2838 = vmatprep.subr.mxu0 0.0
    %2839 = vmatpush1.msra.mxu0 0.0
    %2840 = vmatprep.subr.mxu0 0.0
    %2841 = vmatpush1.msra.mxu0 0.0
    %2842 = vmatprep.subr.mxu0 0.0
    %2843 = vmatpush1.msra.mxu0 0.0
    %2844 = vmatprep.subr.mxu0 0.0
    %2845 = vmatpush1.msra.mxu0 0.0
    %2846 = vmatprep.subr.mxu0 0.0
    %2847 = vmatpush1.msra.mxu0 0.0
    %2848 = vmatprep.subr.mxu0 0.0
    %2849 = vmatpush1.msra.mxu0 0.0
    %2850 = vmatprep.subr.mxu0 0.0
    %2851 = vmatpush1.msra.mxu0 0.0
    %2852 = vmatprep.subr.mxu0 0.0
    %2853 = vmatpush1.msra.mxu0 0.0
    %2854 = vmatprep.subr.mxu0 0.0
    %2855 = vmatpush1.msra.mxu0 0.0
    %2856 = vmatprep.subr.mxu0 0.0
    %2857 = vmatpush1.msra.mxu0 0.0
    %2858 = vmatprep.subr.mxu0 0.0
    %2859 = vmatpush1.msra.mxu0 0.0
    %2860 = vmatprep.subr.mxu0 0.0
    %2861 = vmatpush1.msra.mxu0 0.0
    %2862 = vmatprep.subr.mxu0 0.0
    %2863 = vmatpush1.msra.mxu0 0.0
    %2864 = vmatprep.subr.mxu0 0.0
    %2865 = vmatpush1.msra.mxu0 0.0
    %2866 = vmatprep.subr.mxu0 0.0
    %2867 = vmatpush1.msra.mxu0 0.0
    %2868 = vmatprep.subr.mxu0 0.0
    %2869 = vmatpush1.msra.mxu0 0.0
    %2870 = vmatprep.subr.mxu0 0.0
    %2871 = vmatpush1.msra.mxu0 0.0
    %2872 = vmatprep.subr.mxu0 0.0
    %2873 = vmatpush1.msra.mxu0 0.0
    %2874 = vmatprep.subr.mxu0 0.0
    %2875 = vmatpush1.msra.mxu0 0.0
    %2876 = vmatprep.subr.mxu0 0.0
    %2877 = vmatpush1.msra.mxu0 0.0
    %2878 = vmatprep.subr.mxu0 0.0
    %2879 = vmatpush1.msra.mxu0 0.0
    %2880 = vmatprep.subr.mxu0 0.0
    %2881 = vmatpush1.msra.mxu0 0.0
    %2882 = vmatprep.subr.mxu0 0.0
    %2883 = vmatpush1.msra.mxu0 0.0
    %2884 = vmatprep.mubr.f32.mxu0 0.0
    %2885 = vmatmul.mubr.f32.gmra.mrb[0].mxu0 %v2815
    %v2886 = vpop.f32.mrb[0].mxu0
    %v2887 = vadd.f32 %v2811, %v2886
    %v2888 = vpop.f32.mrb[0].mxu0
    %2889 = vdwg.mxu0
    %v2890 = vmax.f32 %v2887, 0.0
    %v2891 = vld [vmem:[%s6] sm:$0xff]
    %v2892 = vld [vmem:[%s6 + $0x8] sm:$0xff]
    %v2893 = vld [vmem:[%s6 + $0x10] sm:$0xff]
    %v2894 = vld [vmem:[%s6 + $0x18] sm:$0xff]
    %v2895 = vld [vmem:[%s6 + $0x20] sm:$0xff]
    %v2896 = vld [vmem:[%s6 + $0x28] sm:$0xff]
    %v2897 = vld [vmem:[%s6 + $0x30] sm:$0x3]
    %v2898 = vld [vmem:[%s7] sm:$0x1]
    %v2900 = vlaneseq
    %v2901 = vshrl.u32 %v2900, 7
    %v2902 = vsub.s32 0, %v2901
    %v2903 = vrot.slane %v2898, %v2902
    %vm2905 = vcmask 408576
    %v2907 = vsel %vm2905, %v2890, 0
    %vm2909 = vcmask 1041408
    %v2911 = vsel %vm2909, %v2897, 0
    %2913 = vmatprep.subr.mxu0 0.0
    %2914 = vmatpush1.msra.mxu0 %v2891
    %2915 = vmatprep.subr.mxu0 0.0
    %2916 = vmatpush1.msra.mxu0 %v2892
    %2917 = vmatprep.subr.mxu0 0.0
    %2918 = vmatpush1.msra.mxu0 %v2893
    %2919 = vmatprep.subr.mxu0 0.0
    %2920 = vmatpush1.msra.mxu0 %v2894
    %2921 = vmatprep.subr.mxu0 0.0
    %2922 = vmatpush1.msra.mxu0 %v2895
    %2923 = vmatprep.subr.mxu0 0.0
    %2924 = vmatpush1.msra.mxu0 %v2896
    %2925 = vmatprep.subr.mxu0 0.0
    %2926 = vmatpush1.msra.mxu0 %v2911
    %2927 = vmatprep.subr.mxu0 0.0
    %2928 = vmatpush1.msra.mxu0 0.0
    %2929 = vmatprep.subr.mxu0 0.0
    %2930 = vmatpush1.msra.mxu0 0.0
    %2931 = vmatprep.subr.mxu0 0.0
    %2932 = vmatpush1.msra.mxu0 0.0
    %2933 = vmatprep.subr.mxu0 0.0
    %2934 = vmatpush1.msra.mxu0 0.0
    %2935 = vmatprep.subr.mxu0 0.0
    %2936 = vmatpush1.msra.mxu0 0.0
    %2937 = vmatprep.subr.mxu0 0.0
    %2938 = vmatpush1.msra.mxu0 0.0
    %2939 = vmatprep.subr.mxu0 0.0
    %2940 = vmatpush1.msra.mxu0 0.0
    %2941 = vmatprep.subr.mxu0 0.0
    %2942 = vmatpush1.msra.mxu0 0.0
    %2943 = vmatprep.subr.mxu0 0.0
    %2944 = vmatpush1.msra.mxu0 0.0
    %2945 = vmatprep.subr.mxu0 0.0
    %2946 = vmatpush1.msra.mxu0 0.0
    %2947 = vmatprep.subr.mxu0 0.0
    %2948 = vmatpush1.msra.mxu0 0.0
    %2949 = vmatprep.subr.mxu0 0.0
    %2950 = vmatpush1.msra.mxu0 0.0
    %2951 = vmatprep.subr.mxu0 0.0
    %2952 = vmatpush1.msra.mxu0 0.0
    %2953 = vmatprep.subr.mxu0 0.0
    %2954 = vmatpush1.msra.mxu0 0.0
    %2955 = vmatprep.subr.mxu0 0.0
    %2956 = vmatpush1.msra.mxu0 0.0
    %2957 = vmatprep.subr.mxu0 0.0
    %2958 = vmatpush1.msra.mxu0 0.0
    %2959 = vmatprep.subr.mxu0 0.0
    %2960 = vmatpush1.msra.mxu0 0.0
    %2961 = vmatprep.subr.mxu0 0.0
    %2962 = vmatpush1.msra.mxu0 0.0
    %2963 = vmatprep.subr.mxu0 0.0
    %2964 = vmatpush1.msra.mxu0 0.0
    %2965 = vmatprep.subr.mxu0 0.0
    %2966 = vmatpush1.msra.mxu0 0.0
    %2967 = vmatprep.subr.mxu0 0.0
    %2968 = vmatpush1.msra.mxu0 0.0
    %2969 = vmatprep.subr.mxu0 0.0
    %2970 = vmatpush1.msra.mxu0 0.0
    %2971 = vmatprep.subr.mxu0 0.0
    %2972 = vmatpush1.msra.mxu0 0.0
    %2973 = vmatprep.subr.mxu0 0.0
    %2974 = vmatpush1.msra.mxu0 0.0
    %2975 = vmatprep.subr.mxu0 0.0
    %2976 = vmatpush1.msra.mxu0 0.0
    %2977 = vmatprep.mubr.f32.mxu0 0.0
    %2978 = vmatmul.mubr.f32.gmra.mrb[0].mxu0 %v2907
    %v2979 = vpop.f32.mrb[0].mxu0
    %v2980 = vadd.f32 %v2903, %v2979
    %v2981 = vpop.f32.mrb[0].mxu0
    %2982 = vdwg.mxu0
    %2983 = vst [vmem:[#allocation2] sm:$0x3] %v2980
    // Predicated region
    $region34: #{tpu_custom_call.1} parent=1 // pred_check
      _
    $region35: #{tpu_custom_call.1} parent=1 // pred_check_branch
      %2985 = sbr.rel (0) target = $region37
    $region36: #{tpu_custom_call.1} parent=1 // pred_region
      %s2987 = ssub.s32 32, 32
      %2988 = vsyncadd [#allocation3], %s2987
      %s2990 = sshll.u32 [#allocation2], 4
      %s2991 = int_to_ptr.vmem [resolvable:$true] %s2990
      %2993 = dma.vmem_to_hbm [thread:$0]  %s2991, 32, %s8, [#allocation3]
    $region37: #{tpu_custom_call.1} parent=1 // pred_fallthru
      _
    // Predicated region
    $region38: #{tpu_custom_call.1} parent=1 // pred_check
      _
    $region39: #{tpu_custom_call.1} parent=1 // pred_check_branch
      %2995 = sbr.rel (0) target = $region41
    $region40: #{tpu_custom_call.1} parent=1 // pred_region
      %2996 = dma.done [#allocation3], 32
    $region41: #{tpu_custom_call.1} parent=1 // pred_fallthru
      _
    %2997 = vsyncpa [#allocation3], 1

</llo_original>
